<compile_context>
chip_gen: v7x
topology: tpu7x:2x2x1
jax: 0.10.0
libtpu: 0.0.40
codegen_flags: <defaults>
</compile_context>

<pallas_src>
import jax
import jax.numpy as jnp
from jax.experimental import pallas as pl
from jax.experimental.pallas import tpu as pltpu

# ---------------- configuration (small, deterministic) ----------------
BATCH = 2
H, W = 16, 16
IN_C, HID_C, OUT_C = 4, 8, 8        # in != out, stride == 1 -> conv+BN shortcut
KSIZE = 3
STRIDE = 1
SE_RED = 4                          # squeeze-excite reduction
BN_EPS = 1e-5

HW = H * W                          # 256 spatial positions per image
NHW = BATCH * HW                    # 512 -> lane-dense (multiple of 128)
PADL = (KSIZE // 2) * W + (KSIZE // 2)   # flat-lane halo for depthwise windows
NTAPS = KSIZE * KSIZE

# row offsets inside the packed bias column (see pack_params)
B2_OFF = HID_C + OUT_C              # 16
B3_OFF = B2_OFF + HID_C             # 24
BSE2_OFF = B3_OFF + OUT_C           # 32
NBIAS = BSE2_OFF + OUT_C            # 40


def hardswish(x):
    # nn.Hardswish: x * relu6(x + 3) / 6
    return x * jnp.clip(x + 3.0, 0.0, 6.0) * (1.0 / 6.0)


def hardsigmoid(x):
    # relu6(x + 3) / 6
    return jnp.clip(x + 3.0, 0.0, 6.0) * (1.0 / 6.0)


# ----------------------------- Pallas kernel -----------------------------
def bottleneck_kernel(x_ref, wa_ref, wd_ref, w3_ref, wse1_ref, wse2_ref,
                      bse1_ref, bcol_ref, mask_ref, o_ref, pad_ref):
    p = KSIZE // 2

    # ---- fused conv1 + shortcut conv (both 1x1, BN folded into weights) ----
    x = x_ref[...]                                              # [IN_C, NHW]
    a = jnp.dot(wa_ref[...], x, preferred_element_type=jnp.float32)
    a = a + bcol_ref[0:HID_C + OUT_C]                           # [HID+OUT, NHW]
    h1 = hardswish(a[0:HID_C])                                  # expand branch
    sc = a[HID_C:HID_C + OUT_C]                                 # shortcut branch

    # ---- depthwise KxK conv (stride 1), BN scale folded into the taps ----
    # h1 is staged in a [HID, NHW + 2*halo] VMEM scratch; each tap is a dense
    # lane-contiguous shifted window.  Invalid (out-of-image / cross-image)
    # positions are zeroed with precomputed multiplicative masks; the scratch is
    # zero-initialised so the masked values are always finite.
    pad_ref[...] = jnp.zeros(pad_ref.shape, jnp.float32)
    pad_ref[:, PADL:PADL + NHW] = h1
    acc = jnp.zeros((HID_C, NHW), jnp.float32)
    for t in range(NTAPS):                                      # 9 static taps
        dy, dx = t // KSIZE, t % KSIZE
        off = (dy - p) * W + (dx - p)
        win = pad_ref[:, PADL + off:PADL + off + NHW]           # [HID, NHW]
        tap = wd_ref[:, t:t + 1] * mask_ref[t:t + 1, :]         # [HID, NHW]
        acc = acc + win * tap
    h2 = hardswish(acc + bcol_ref[B2_OFF:B2_OFF + HID_C])

    # ---- conv3 (1x1) + folded BN ----
    h3 = jnp.dot(w3_ref[...], h2, preferred_element_type=jnp.float32)
    h3 = h3 + bcol_ref[B3_OFF:B3_OFF + OUT_C]                   # [OUT, NHW]

    # ---- per-image squeeze-excite gate + residual (VPU/XLU only) ----
    bse2 = bcol_ref[BSE2_OFF:BSE2_OFF + OUT_C]                  # [OUT, 1]
    gates = []
    for n in range(BATCH):                                      # static, tiny
        s = n * HW
        pooled = jnp.mean(h3[:, s:s + HW], axis=1, keepdims=True)   # GAP [OUT, 1]
        z = jnp.sum(wse1_ref[...] * pooled, axis=0, keepdims=True) + bse1_ref[...]
        z = jnp.maximum(z, 0.0)                                 # [1, RED]
        g = jnp.sum(wse2_ref[...] * z, axis=1, keepdims=True) + bse2
        gates.append(jnp.broadcast_to(hardsigmoid(g), (OUT_C, HW)))
    gate_full = gates[0] if BATCH == 1 else jnp.concatenate(gates, axis=1)
    # single lane-dense (OUT, NHW) store
    o_ref[...] = h3 * gate_full + sc


# ------------------------------ wrapper ------------------------------
def _bottleneck_se_pallas(x_nchw, kp):
    n, c, h, w = x_nchw.shape
    assert (n, c, h, w) == (BATCH, IN_C, H, W)
    # NCHW -> channels-major [Cin, N*H*W] (lane index = n*H*W + h*W + w)
    x_cm = jnp.transpose(x_nchw, (1, 0, 2, 3)).reshape(IN_C, NHW)

    inputs = (x_cm, kp['wa'], kp['wd'], kp['w3'], kp['wse1'], kp['wse2'],
              kp['bse1'], kp['bcol'], kp['tap_mask'])
    in_specs = [pl.BlockSpec(a.shape, lambda i, _nd=a.ndim: (0,) * _nd)
                for a in inputs]

    out_cm = pl.pallas_call(
        bottleneck_kernel,
        out_shape=jax.ShapeDtypeStruct((OUT_C, NHW), jnp.float32),
        grid=(1,),                      # whole batch-merged problem in one step
        in_specs=in_specs,
        out_specs=pl.BlockSpec((OUT_C, NHW), lambda i: (0, 0)),
        scratch_shapes=[pltpu.VMEM((HID_C, NHW + 2 * PADL), jnp.float32)],
        compiler_params=pltpu.CompilerParams(
            dimension_semantics=("arbitrary",)),
    )(*inputs)

    # [OUT, N*H*W] -> NCHW to match the PyTorch module's output layout
    return jnp.transpose(out_cm.reshape(OUT_C, BATCH, H, W), (1, 0, 2, 3))


bottleneck_se_pallas = jax.jit(_bottleneck_se_pallas)


# ------------------- parameter generation and packing -------------------
def make_raw_params(key):
    """PyTorch-layout weights + BatchNorm stats (inference mode)."""
    ks = jax.random.split(key, 12)

    def wgt(k, shape):
        return 0.2 * jax.random.normal(k, shape, jnp.float32)

    def bn(k, c):
        k1, k2, k3, k4 = jax.random.split(k, 4)
        gamma = 1.0 + 0.1 * jax.random.normal(k1, (c,), jnp.float32)
        beta = 0.1 * jax.random.normal(k2, (c,), jnp.float32)
        mean = 0.1 * jax.random.normal(k3, (c,), jnp.float32)
        var = jax.random.uniform(k4, (c,), jnp.float32, minval=0.5, maxval=1.5)
        return (gamma, beta, mean, var)

    P = {}
    P['w1'] = wgt(ks[0], (HID_C, IN_C))            # conv1 1x1 [out, in]
    P['bn1'] = bn(ks[1], HID_C)
    P['wd'] = wgt(ks[2], (HID_C, KSIZE, KSIZE))    # depthwise [hid, 1, k, k] squeezed
    P['bn2'] = bn(ks[3], HID_C)
    P['w3'] = wgt(ks[4], (OUT_C, HID_C))           # conv3 1x1 [out, hid]
    P['bn3'] = bn(ks[5], OUT_C)
    P['wse1'] = wgt(ks[6], (OUT_C // SE_RED, OUT_C))
    P['bse1'] = 0.1 * jax.random.normal(ks[7], (OUT_C // SE_RED,), jnp.float32)
    P['wse2'] = wgt(ks[8], (OUT_C, OUT_C // SE_RED))
    P['bse2'] = 0.1 * jax.random.normal(ks[9], (OUT_C,), jnp.float32)
    P['wsc'] = wgt(ks[10], (OUT_C, IN_C))          # shortcut 1x1 conv
    P['bnsc'] = bn(ks[11], OUT_C)
    return P


def pack_params(raw):
    """Fold inference BatchNorm into the convs and pack kernel-friendly slabs."""
    def fold(prm):
        gamma, beta, mean, var = prm
        s = gamma / jnp.sqrt(var + BN_EPS)
        return s, beta - mean * s

    s1, b1 = fold(raw['bn1'])
    s2, b2 = fold(raw['bn2'])
    s3, b3 = fold(raw['bn3'])
    ssc, bsc = fold(raw['bnsc'])

    wa = jnp.concatenate([raw['w1'] * s1[:, None],
                          raw['wsc'] * ssc[:, None]], axis=0)           # [HID+OUT, IN]
    wd = (raw['wd'] * s2[:, None, None]).reshape(HID_C, NTAPS)          # [HID, K*K]
    w3 = raw['w3'] * s3[:, None]                                        # [OUT, HID]
    bcol = jnp.concatenate([b1, bsc, b2, b3, raw['bse2']])[:, None]     # [NBIAS, 1]

    # precomputed depthwise tap validity masks: [K*K, NHW] float32
    p = KSIZE // 2
    lane = jnp.arange(NHW, dtype=jnp.int32) % HW
    hh, ww = lane // W, lane % W
    masks = []
    for t in range(NTAPS):
        dy, dx = t // KSIZE, t % KSIZE
        masks.append((hh >= p - dy) & (hh < H + p - dy) &
                     (ww >= p - dx) & (ww < W + p - dx))
    tap_mask = jnp.stack(masks).astype(jnp.float32)                     # [9, NHW]

    return dict(wa=wa, wd=wd, w3=w3,
                wse1=raw['wse1'].T,          # [OUT, RED]  (transposed for VPU SE)
                wse2=raw['wse2'],            # [OUT, RED]
                bse1=raw['bse1'][None, :],   # [1, RED]
                bcol=bcol, tap_mask=tap_mask)


# ------------------------- plain-JAX reference -------------------------
def reference(x, P):
    """Straightforward NCHW implementation of the PyTorch forward (inference BN)."""
    def bn(y, prm):
        g, b, m, v = prm
        inv = 1.0 / jnp.sqrt(v + BN_EPS)
        return ((y - m[None, :, None, None]) * (g * inv)[None, :, None, None]
                + b[None, :, None, None])

    nb, _, hh, ww = x.shape
    p = KSIZE // 2
    y = hardswish(bn(jnp.einsum('oc,nchw->nohw', P['w1'], x), P['bn1']))
    yp = jnp.pad(y, ((0, 0), (0, 0), (p, p), (p, p)))
    acc = jnp.zeros_like(y)
    for dy in range(KSIZE):
        for dx in range(KSIZE):
            acc = acc + (yp[:, :, dy:dy + hh, dx:dx + ww]
                         * P['wd'][None, :, dy, dx, None, None])
    y = hardswish(bn(acc, P['bn2']))
    y = bn(jnp.einsum('oc,nchw->nohw', P['w3'], y), P['bn3'])
    pooled = jnp.mean(y, axis=(2, 3))                              # [N, OUT]
    z = jnp.maximum(pooled @ P['wse1'].T + P['bse1'], 0.0)         # [N, RED]
    gate = hardsigmoid(z @ P['wse2'].T + P['bse2'])                # [N, OUT]
    y = y * gate[:, :, None, None]
    sc = bn(jnp.einsum('oc,nchw->nohw', P['wsc'], x), P['bnsc'])
    return y + sc


if __name__ == "__main__":
    key = jax.random.PRNGKey(0)
    kx, kparam = jax.random.split(key)
    # PyTorch-style NCHW input
    x_nchw = jax.random.normal(kx, (BATCH, IN_C, H, W), jnp.float32)
    raw = make_raw_params(kparam)
    kp = pack_params(raw)

    out = bottleneck_se_pallas(x_nchw, kp)
    out = jax.block_until_ready(out)

    ref = reference(x_nchw, raw)
    assert out.shape == (BATCH, OUT_C, H, W), out.shape
    err = float(jnp.max(jnp.abs(out - ref)))
    assert err < 1e-4, f"kernel/reference mismatch: max abs err = {err}"
    print("KERNEL_OK")
</pallas_src>

<mosaic_0001>
module attributes {stable_mosaic.version = 11 : i64} {
  func.func @bottleneck_kernel(%arg0: i32, %arg1: memref<4x512xf32, #tpu.memory_space<vmem>>, %arg2: memref<16x4xf32, #tpu.memory_space<vmem>>, %arg3: memref<8x9xf32, #tpu.memory_space<vmem>>, %arg4: memref<8x8xf32, #tpu.memory_space<vmem>>, %arg5: memref<8x2xf32, #tpu.memory_space<vmem>>, %arg6: memref<8x2xf32, #tpu.memory_space<vmem>>, %arg7: memref<1x2xf32, #tpu.memory_space<vmem>>, %arg8: memref<40x1xf32, #tpu.memory_space<vmem>>, %arg9: memref<9x512xf32, #tpu.memory_space<vmem>>, %arg10: memref<8x512xf32, #tpu.memory_space<vmem>>, %arg11: memref<8x546xf32, #tpu.memory_space<vmem>>) attributes {dimension_semantics = [#tpu.dimension_semantics<arbitrary>], iteration_bounds = array<i64: 1>, scalar_prefetch = 0 : i64, scratch_operands = 1 : i64, tpu.core_type = #tpu.core_type<tc>, window_params = [{pipeline_mode = #tpu.pipeline_mode<synchronous>, transform_indices = @transform_0, window_bounds = array<i64: 4, 512>}, {pipeline_mode = #tpu.pipeline_mode<synchronous>, transform_indices = @transform_1, window_bounds = array<i64: 16, 4>}, {pipeline_mode = #tpu.pipeline_mode<synchronous>, transform_indices = @transform_2, window_bounds = array<i64: 8, 9>}, {pipeline_mode = #tpu.pipeline_mode<synchronous>, transform_indices = @transform_3, window_bounds = array<i64: 8, 8>}, {pipeline_mode = #tpu.pipeline_mode<synchronous>, transform_indices = @transform_4, window_bounds = array<i64: 8, 2>}, {pipeline_mode = #tpu.pipeline_mode<synchronous>, transform_indices = @transform_5, window_bounds = array<i64: 8, 2>}, {pipeline_mode = #tpu.pipeline_mode<synchronous>, transform_indices = @transform_6, window_bounds = array<i64: 1, 2>}, {pipeline_mode = #tpu.pipeline_mode<synchronous>, transform_indices = @transform_7, window_bounds = array<i64: 40, 1>}, {pipeline_mode = #tpu.pipeline_mode<synchronous>, transform_indices = @transform_8, window_bounds = array<i64: 9, 512>}, {pipeline_mode = #tpu.pipeline_mode<synchronous>, transform_indices = @transform_9, window_bounds = array<i64: 8, 512>}]} {
    %c0 = arith.constant 0 : index
    %c0_0 = arith.constant 0 : index
    %0 = vector.load %arg1[%c0, %c0_0] : memref<4x512xf32, #tpu.memory_space<vmem>>, vector<4x512xf32>
    %c0_1 = arith.constant 0 : index
    %c0_2 = arith.constant 0 : index
    %1 = vector.load %arg2[%c0_1, %c0_2] : memref<16x4xf32, #tpu.memory_space<vmem>>, vector<16x4xf32>
    %cst = arith.constant dense<0.000000e+00> : vector<16x512xf32>
    %2 = tpu.matmul %1, %0, %cst {dimension_numbers = #tpu.dot_dimension_numbers<[1], [0], [0], [1], [0, 0, 1, 1], [], []>} : vector<16x4xf32>, vector<4x512xf32>, vector<16x512xf32> -> vector<16x512xf32>
    %c0_3 = arith.constant 0 : index
    %c0_4 = arith.constant 0 : index
    %3 = vector.load %arg8[%c0_3, %c0_4] : memref<40x1xf32, #tpu.memory_space<vmem>>, vector<16x1xf32>
    %4 = vector.broadcast %3 : vector<16x1xf32> to vector<16x512xf32>
    %5 = arith.addf %2, %4 : vector<16x512xf32>
    %6 = vector.extract_strided_slice %5 {offsets = [0, 0], sizes = [8, 512], strides = [1, 1]} : vector<16x512xf32> to vector<8x512xf32>
    %cst_5 = arith.constant 3.000000e+00 : f32
    %7 = vector.broadcast %cst_5 : f32 to vector<8x512xf32>
    %8 = arith.addf %6, %7 : vector<8x512xf32>
    %cst_6 = arith.constant 0.000000e+00 : f32
    %cst_7 = arith.constant 6.000000e+00 : f32
    %9 = vector.broadcast %cst_6 : f32 to vector<8x512xf32>
    %10 = arith.maximumf %9, %8 : vector<8x512xf32>
    %11 = vector.broadcast %cst_7 : f32 to vector<8x512xf32>
    %12 = arith.minimumf %11, %10 : vector<8x512xf32>
    %13 = arith.mulf %6, %12 : vector<8x512xf32>
    %cst_8 = arith.constant 0.166666672 : f32
    %14 = vector.broadcast %cst_8 : f32 to vector<8x512xf32>
    %15 = arith.mulf %13, %14 : vector<8x512xf32>
    %16 = vector.extract_strided_slice %5 {offsets = [8, 0], sizes = [8, 512], strides = [1, 1]} : vector<16x512xf32> to vector<8x512xf32>
    %cst_9 = arith.constant 0.000000e+00 : f32
    %17 = vector.broadcast %cst_9 : f32 to vector<8x546xf32>
    %c0_10 = arith.constant 0 : index
    %c0_11 = arith.constant 0 : index
    %18 = vector.load %arg11[%c0_10, %c0_11] : memref<8x546xf32, #tpu.memory_space<vmem>>, vector<8x546xf32>
    tpu.vector_store %arg11[%c0_10, %c0_11], %17 {strides = array<i32>} : memref<8x546xf32, #tpu.memory_space<vmem>>, vector<8x546xf32>,
    %c0_12 = arith.constant 0 : index
    %c17 = arith.constant 17 : index
    %19 = vector.load %arg11[%c0_12, %c17] : memref<8x546xf32, #tpu.memory_space<vmem>>, vector<8x512xf32>
    tpu.vector_store %arg11[%c0_12, %c17], %15 {strides = array<i32>} : memref<8x546xf32, #tpu.memory_space<vmem>>, vector<8x512xf32>,
    %cst_13 = arith.constant 0.000000e+00 : f32
    %20 = vector.broadcast %cst_13 : f32 to vector<8x512xf32>
    %c0_14 = arith.constant 0 : index
    %c0_15 = arith.constant 0 : index
    %21 = vector.load %arg11[%c0_14, %c0_15] : memref<8x546xf32, #tpu.memory_space<vmem>>, vector<8x512xf32>
    %c0_16 = arith.constant 0 : index
    %c0_17 = arith.constant 0 : index
    %22 = vector.load %arg3[%c0_16, %c0_17] : memref<8x9xf32, #tpu.memory_space<vmem>>, vector<8x1xf32>
    %c0_18 = arith.constant 0 : index
    %c0_19 = arith.constant 0 : index
    %23 = vector.load %arg9[%c0_18, %c0_19] : memref<9x512xf32, #tpu.memory_space<vmem>>, vector<1x512xf32>
    %24 = vector.broadcast %22 : vector<8x1xf32> to vector<8x512xf32>
    %25 = vector.broadcast %23 : vector<1x512xf32> to vector<8x512xf32>
    %26 = arith.mulf %24, %25 : vector<8x512xf32>
    %27 = arith.mulf %21, %26 : vector<8x512xf32>
    %28 = arith.addf %20, %27 : vector<8x512xf32>
    %c0_20 = arith.constant 0 : index
    %c1 = arith.constant 1 : index
    %29 = vector.load %arg11[%c0_20, %c1] : memref<8x546xf32, #tpu.memory_space<vmem>>, vector<8x512xf32>
    %c0_21 = arith.constant 0 : index
    %c1_22 = arith.constant 1 : index
    %30 = vector.load %arg3[%c0_21, %c1_22] : memref<8x9xf32, #tpu.memory_space<vmem>>, vector<8x1xf32>
    %c1_23 = arith.constant 1 : index
    %c0_24 = arith.constant 0 : index
    %31 = vector.load %arg9[%c1_23, %c0_24] : memref<9x512xf32, #tpu.memory_space<vmem>>, vector<1x512xf32>
    %32 = vector.broadcast %30 : vector<8x1xf32> to vector<8x512xf32>
    %33 = vector.broadcast %31 : vector<1x512xf32> to vector<8x512xf32>
    %34 = arith.mulf %32, %33 : vector<8x512xf32>
    %35 = arith.mulf %29, %34 : vector<8x512xf32>
    %36 = arith.addf %28, %35 : vector<8x512xf32>
    %c0_25 = arith.constant 0 : index
    %c2 = arith.constant 2 : index
    %37 = vector.load %arg11[%c0_25, %c2] : memref<8x546xf32, #tpu.memory_space<vmem>>, vector<8x512xf32>
    %c0_26 = arith.constant 0 : index
    %c2_27 = arith.constant 2 : index
    %38 = vector.load %arg3[%c0_26, %c2_27] : memref<8x9xf32, #tpu.memory_space<vmem>>, vector<8x1xf32>
    %c2_28 = arith.constant 2 : index
    %c0_29 = arith.constant 0 : index
    %39 = vector.load %arg9[%c2_28, %c0_29] : memref<9x512xf32, #tpu.memory_space<vmem>>, vector<1x512xf32>
    %40 = vector.broadcast %38 : vector<8x1xf32> to vector<8x512xf32>
    %41 = vector.broadcast %39 : vector<1x512xf32> to vector<8x512xf32>
    %42 = arith.mulf %40, %41 : vector<8x512xf32>
    %43 = arith.mulf %37, %42 : vector<8x512xf32>
    %44 = arith.addf %36, %43 : vector<8x512xf32>
    %c0_30 = arith.constant 0 : index
    %c16 = arith.constant 16 : index
    %45 = vector.load %arg11[%c0_30, %c16] : memref<8x546xf32, #tpu.memory_space<vmem>>, vector<8x512xf32>
    %c0_31 = arith.constant 0 : index
    %c3 = arith.constant 3 : index
    %46 = vector.load %arg3[%c0_31, %c3] : memref<8x9xf32, #tpu.memory_space<vmem>>, vector<8x1xf32>
    %c3_32 = arith.constant 3 : index
    %c0_33 = arith.constant 0 : index
    %47 = vector.load %arg9[%c3_32, %c0_33] : memref<9x512xf32, #tpu.memory_space<vmem>>, vector<1x512xf32>
    %48 = vector.broadcast %46 : vector<8x1xf32> to vector<8x512xf32>
    %49 = vector.broadcast %47 : vector<1x512xf32> to vector<8x512xf32>
    %50 = arith.mulf %48, %49 : vector<8x512xf32>
    %51 = arith.mulf %45, %50 : vector<8x512xf32>
    %52 = arith.addf %44, %51 : vector<8x512xf32>
    %c0_34 = arith.constant 0 : index
    %c17_35 = arith.constant 17 : index
    %53 = vector.load %arg11[%c0_34, %c17_35] : memref<8x546xf32, #tpu.memory_space<vmem>>, vector<8x512xf32>
    %c0_36 = arith.constant 0 : index
    %c4 = arith.constant 4 : index
    %54 = vector.load %arg3[%c0_36, %c4] : memref<8x9xf32, #tpu.memory_space<vmem>>, vector<8x1xf32>
    %c4_37 = arith.constant 4 : index
    %c0_38 = arith.constant 0 : index
    %55 = vector.load %arg9[%c4_37, %c0_38] : memref<9x512xf32, #tpu.memory_space<vmem>>, vector<1x512xf32>
    %56 = vector.broadcast %54 : vector<8x1xf32> to vector<8x512xf32>
    %57 = vector.broadcast %55 : vector<1x512xf32> to vector<8x512xf32>
    %58 = arith.mulf %56, %57 : vector<8x512xf32>
    %59 = arith.mulf %53, %58 : vector<8x512xf32>
    %60 = arith.addf %52, %59 : vector<8x512xf32>
    %c0_39 = arith.constant 0 : index
    %c18 = arith.constant 18 : index
    %61 = vector.load %arg11[%c0_39, %c18] : memref<8x546xf32, #tpu.memory_space<vmem>>, vector<8x512xf32>
    %c0_40 = arith.constant 0 : index
    %c5 = arith.constant 5 : index
    %62 = vector.load %arg3[%c0_40, %c5] : memref<8x9xf32, #tpu.memory_space<vmem>>, vector<8x1xf32>
    %c5_41 = arith.constant 5 : index
    %c0_42 = arith.constant 0 : index
    %63 = vector.load %arg9[%c5_41, %c0_42] : memref<9x512xf32, #tpu.memory_space<vmem>>, vector<1x512xf32>
    %64 = vector.broadcast %62 : vector<8x1xf32> to vector<8x512xf32>
    %65 = vector.broadcast %63 : vector<1x512xf32> to vector<8x512xf32>
    %66 = arith.mulf %64, %65 : vector<8x512xf32>
    %67 = arith.mulf %61, %66 : vector<8x512xf32>
    %68 = arith.addf %60, %67 : vector<8x512xf32>
    %c0_43 = arith.constant 0 : index
    %c32 = arith.constant 32 : index
    %69 = vector.load %arg11[%c0_43, %c32] : memref<8x546xf32, #tpu.memory_space<vmem>>, vector<8x512xf32>
    %c0_44 = arith.constant 0 : index
    %c6 = arith.constant 6 : index
    %70 = vector.load %arg3[%c0_44, %c6] : memref<8x9xf32, #tpu.memory_space<vmem>>, vector<8x1xf32>
    %c6_45 = arith.constant 6 : index
    %c0_46 = arith.constant 0 : index
    %71 = vector.load %arg9[%c6_45, %c0_46] : memref<9x512xf32, #tpu.memory_space<vmem>>, vector<1x512xf32>
    %72 = vector.broadcast %70 : vector<8x1xf32> to vector<8x512xf32>
    %73 = vector.broadcast %71 : vector<1x512xf32> to vector<8x512xf32>
    %74 = arith.mulf %72, %73 : vector<8x512xf32>
    %75 = arith.mulf %69, %74 : vector<8x512xf32>
    %76 = arith.addf %68, %75 : vector<8x512xf32>
    %c0_47 = arith.constant 0 : index
    %c33 = arith.constant 33 : index
    %77 = vector.load %arg11[%c0_47, %c33] : memref<8x546xf32, #tpu.memory_space<vmem>>, vector<8x512xf32>
    %c0_48 = arith.constant 0 : index
    %c7 = arith.constant 7 : index
    %78 = vector.load %arg3[%c0_48, %c7] : memref<8x9xf32, #tpu.memory_space<vmem>>, vector<8x1xf32>
    %c7_49 = arith.constant 7 : index
    %c0_50 = arith.constant 0 : index
    %79 = vector.load %arg9[%c7_49, %c0_50] : memref<9x512xf32, #tpu.memory_space<vmem>>, vector<1x512xf32>
    %80 = vector.broadcast %78 : vector<8x1xf32> to vector<8x512xf32>
    %81 = vector.broadcast %79 : vector<1x512xf32> to vector<8x512xf32>
    %82 = arith.mulf %80, %81 : vector<8x512xf32>
    %83 = arith.mulf %77, %82 : vector<8x512xf32>
    %84 = arith.addf %76, %83 : vector<8x512xf32>
    %c0_51 = arith.constant 0 : index
    %c34 = arith.constant 34 : index
    %85 = vector.load %arg11[%c0_51, %c34] : memref<8x546xf32, #tpu.memory_space<vmem>>, vector<8x512xf32>
    %c0_52 = arith.constant 0 : index
    %c8 = arith.constant 8 : index
    %86 = vector.load %arg3[%c0_52, %c8] : memref<8x9xf32, #tpu.memory_space<vmem>>, vector<8x1xf32>
    %c8_53 = arith.constant 8 : index
    %c0_54 = arith.constant 0 : index
    %87 = vector.load %arg9[%c8_53, %c0_54] : memref<9x512xf32, #tpu.memory_space<vmem>>, vector<1x512xf32>
    %88 = vector.broadcast %86 : vector<8x1xf32> to vector<8x512xf32>
    %89 = vector.broadcast %87 : vector<1x512xf32> to vector<8x512xf32>
    %90 = arith.mulf %88, %89 : vector<8x512xf32>
    %91 = arith.mulf %85, %90 : vector<8x512xf32>
    %92 = arith.addf %84, %91 : vector<8x512xf32>
    %c16_55 = arith.constant 16 : index
    %c0_56 = arith.constant 0 : index
    %93 = vector.load %arg8[%c16_55, %c0_56] : memref<40x1xf32, #tpu.memory_space<vmem>>, vector<8x1xf32>
    %94 = vector.broadcast %93 : vector<8x1xf32> to vector<8x512xf32>
    %95 = arith.addf %92, %94 : vector<8x512xf32>
    %cst_57 = arith.constant 3.000000e+00 : f32
    %96 = vector.broadcast %cst_57 : f32 to vector<8x512xf32>
    %97 = arith.addf %95, %96 : vector<8x512xf32>
    %cst_58 = arith.constant 0.000000e+00 : f32
    %cst_59 = arith.constant 6.000000e+00 : f32
    %98 = vector.broadcast %cst_58 : f32 to vector<8x512xf32>
    %99 = arith.maximumf %98, %97 : vector<8x512xf32>
    %100 = vector.broadcast %cst_59 : f32 to vector<8x512xf32>
    %101 = arith.minimumf %100, %99 : vector<8x512xf32>
    %102 = arith.mulf %95, %101 : vector<8x512xf32>
    %cst_60 = arith.constant 0.166666672 : f32
    %103 = vector.broadcast %cst_60 : f32 to vector<8x512xf32>
    %104 = arith.mulf %102, %103 : vector<8x512xf32>
    %c0_61 = arith.constant 0 : index
    %c0_62 = arith.constant 0 : index
    %105 = vector.load %arg4[%c0_61, %c0_62] : memref<8x8xf32, #tpu.memory_space<vmem>>, vector<8x8xf32>
    %cst_63 = arith.constant dense<0.000000e+00> : vector<8x512xf32>
    %106 = tpu.matmul %105, %104, %cst_63 {dimension_numbers = #tpu.dot_dimension_numbers<[1], [0], [0], [1], [0, 0, 1, 1], [], []>} : vector<8x8xf32>, vector<8x512xf32>, vector<8x512xf32> -> vector<8x512xf32>
    %c24 = arith.constant 24 : index
    %c0_64 = arith.constant 0 : index
    %107 = vector.load %arg8[%c24, %c0_64] : memref<40x1xf32, #tpu.memory_space<vmem>>, vector<8x1xf32>
    %108 = vector.broadcast %107 : vector<8x1xf32> to vector<8x512xf32>
    %109 = arith.addf %106, %108 : vector<8x512xf32>
    %c32_65 = arith.constant 32 : index
    %c0_66 = arith.constant 0 : index
    %110 = vector.load %arg8[%c32_65, %c0_66] : memref<40x1xf32, #tpu.memory_space<vmem>>, vector<8x1xf32>
    %111 = vector.extract_strided_slice %109 {offsets = [0, 0], sizes = [8, 256], strides = [1, 1]} : vector<8x512xf32> to vector<8x256xf32>
    %cst_67 = arith.constant dense<0.000000e+00> : vector<8xf32>
    %112 = vector.multi_reduction <add>, %111, %cst_67 [1] : vector<8x256xf32> to vector<8xf32>
    %113 = vector.shape_cast %112 : vector<8xf32> to vector<8x1xf32>
    %cst_68 = arith.constant 2.560000e+02 : f32
    %114 = vector.broadcast %cst_68 : f32 to vector<8x1xf32>
    %115 = arith.divf %113, %114 : vector<8x1xf32>
    %c0_69 = arith.constant 0 : index
    %c0_70 = arith.constant 0 : index
    %116 = vector.load %arg5[%c0_69, %c0_70] : memref<8x2xf32, #tpu.memory_space<vmem>>, vector<8x2xf32>
    %117 = vector.broadcast %115 : vector<8x1xf32> to vector<8x2xf32>
    %118 = arith.mulf %116, %117 : vector<8x2xf32>
    %cst_71 = arith.constant dense<0.000000e+00> : vector<2xf32>
    %119 = vector.multi_reduction <add>, %118, %cst_71 [0] : vector<8x2xf32> to vector<2xf32>
    %120 = vector.shape_cast %119 : vector<2xf32> to vector<1x2xf32>
    %c0_72 = arith.constant 0 : index
    %c0_73 = arith.constant 0 : index
    %121 = vector.load %arg7[%c0_72, %c0_73] : memref<1x2xf32, #tpu.memory_space<vmem>>, vector<1x2xf32>
    %122 = arith.addf %120, %121 : vector<1x2xf32>
    %cst_74 = arith.constant 0.000000e+00 : f32
    %123 = vector.broadcast %cst_74 : f32 to vector<1x2xf32>
    %124 = arith.maximumf %122, %123 : vector<1x2xf32>
    %c0_75 = arith.constant 0 : index
    %c0_76 = arith.constant 0 : index
    %125 = vector.load %arg6[%c0_75, %c0_76] : memref<8x2xf32, #tpu.memory_space<vmem>>, vector<8x2xf32>
    %126 = vector.broadcast %124 : vector<1x2xf32> to vector<8x2xf32>
    %127 = arith.mulf %125, %126 : vector<8x2xf32>
    %cst_77 = arith.constant dense<0.000000e+00> : vector<8xf32>
    %128 = vector.multi_reduction <add>, %127, %cst_77 [1] : vector<8x2xf32> to vector<8xf32>
    %129 = vector.shape_cast %128 : vector<8xf32> to vector<8x1xf32>
    %130 = arith.addf %129, %110 : vector<8x1xf32>
    %cst_78 = arith.constant 3.000000e+00 : f32
    %131 = vector.broadcast %cst_78 : f32 to vector<8x1xf32>
    %132 = arith.addf %130, %131 : vector<8x1xf32>
    %cst_79 = arith.constant 0.000000e+00 : f32
    %cst_80 = arith.constant 6.000000e+00 : f32
    %133 = vector.broadcast %cst_79 : f32 to vector<8x1xf32>
    %134 = arith.maximumf %133, %132 : vector<8x1xf32>
    %135 = vector.broadcast %cst_80 : f32 to vector<8x1xf32>
    %136 = arith.minimumf %135, %134 : vector<8x1xf32>
    %cst_81 = arith.constant 0.166666672 : f32
    %137 = vector.broadcast %cst_81 : f32 to vector<8x1xf32>
    %138 = arith.mulf %136, %137 : vector<8x1xf32>
    %139 = vector.shape_cast %138 : vector<8x1xf32> to vector<8x1xf32>
    %140 = vector.broadcast %139 : vector<8x1xf32> to vector<8x256xf32>
    %141 = vector.extract_strided_slice %109 {offsets = [0, 256], sizes = [8, 256], strides = [1, 1]} : vector<8x512xf32> to vector<8x256xf32>
    %cst_82 = arith.constant dense<0.000000e+00> : vector<8xf32>
    %142 = vector.multi_reduction <add>, %141, %cst_82 [1] : vector<8x256xf32> to vector<8xf32>
    %143 = vector.shape_cast %142 : vector<8xf32> to vector<8x1xf32>
    %cst_83 = arith.constant 2.560000e+02 : f32
    %144 = vector.broadcast %cst_83 : f32 to vector<8x1xf32>
    %145 = arith.divf %143, %144 : vector<8x1xf32>
    %c0_84 = arith.constant 0 : index
    %c0_85 = arith.constant 0 : index
    %146 = vector.load %arg5[%c0_84, %c0_85] : memref<8x2xf32, #tpu.memory_space<vmem>>, vector<8x2xf32>
    %147 = vector.broadcast %145 : vector<8x1xf32> to vector<8x2xf32>
    %148 = arith.mulf %146, %147 : vector<8x2xf32>
    %cst_86 = arith.constant dense<0.000000e+00> : vector<2xf32>
    %149 = vector.multi_reduction <add>, %148, %cst_86 [0] : vector<8x2xf32> to vector<2xf32>
    %150 = vector.shape_cast %149 : vector<2xf32> to vector<1x2xf32>
    %c0_87 = arith.constant 0 : index
    %c0_88 = arith.constant 0 : index
    %151 = vector.load %arg7[%c0_87, %c0_88] : memref<1x2xf32, #tpu.memory_space<vmem>>, vector<1x2xf32>
    %152 = arith.addf %150, %151 : vector<1x2xf32>
    %cst_89 = arith.constant 0.000000e+00 : f32
    %153 = vector.broadcast %cst_89 : f32 to vector<1x2xf32>
    %154 = arith.maximumf %152, %153 : vector<1x2xf32>
    %c0_90 = arith.constant 0 : index
    %c0_91 = arith.constant 0 : index
    %155 = vector.load %arg6[%c0_90, %c0_91] : memref<8x2xf32, #tpu.memory_space<vmem>>, vector<8x2xf32>
    %156 = vector.broadcast %154 : vector<1x2xf32> to vector<8x2xf32>
    %157 = arith.mulf %155, %156 : vector<8x2xf32>
    %cst_92 = arith.constant dense<0.000000e+00> : vector<8xf32>
    %158 = vector.multi_reduction <add>, %157, %cst_92 [1] : vector<8x2xf32> to vector<8xf32>
    %159 = vector.shape_cast %158 : vector<8xf32> to vector<8x1xf32>
    %160 = arith.addf %159, %110 : vector<8x1xf32>
    %cst_93 = arith.constant 3.000000e+00 : f32
    %161 = vector.broadcast %cst_93 : f32 to vector<8x1xf32>
    %162 = arith.addf %160, %161 : vector<8x1xf32>
    %cst_94 = arith.constant 0.000000e+00 : f32
    %cst_95 = arith.constant 6.000000e+00 : f32
    %163 = vector.broadcast %cst_94 : f32 to vector<8x1xf32>
    %164 = arith.maximumf %163, %162 : vector<8x1xf32>
    %165 = vector.broadcast %cst_95 : f32 to vector<8x1xf32>
    %166 = arith.minimumf %165, %164 : vector<8x1xf32>
    %cst_96 = arith.constant 0.166666672 : f32
    %167 = vector.broadcast %cst_96 : f32 to vector<8x1xf32>
    %168 = arith.mulf %166, %167 : vector<8x1xf32>
    %169 = vector.shape_cast %168 : vector<8x1xf32> to vector<8x1xf32>
    %170 = vector.broadcast %169 : vector<8x1xf32> to vector<8x256xf32>
    %171 = tpu.concatenate %140, %170 in 1 : vector<8x256xf32>, vector<8x256xf32> -> vector<8x512xf32>
    %172 = arith.mulf %109, %171 : vector<8x512xf32>
    %173 = arith.addf %172, %16 : vector<8x512xf32>
    %c0_97 = arith.constant 0 : index
    %c0_98 = arith.constant 0 : index
    %174 = vector.load %arg10[%c0_97, %c0_98] : memref<8x512xf32, #tpu.memory_space<vmem>>, vector<8x512xf32>
    tpu.vector_store %arg10[%c0_97, %c0_98], %173 {strides = array<i32>} : memref<8x512xf32, #tpu.memory_space<vmem>>, vector<8x512xf32>,
    return
  }
  func.func @transform_0(%arg0: i32) -> (i32, i32) {
    %c0_i32 = arith.constant 0 : i32
    %c0_i32_0 = arith.constant 0 : i32
    %c0_i32_1 = arith.constant 0 : i32
    return %c0_i32, %c0_i32_0 : i32, i32
  }
  func.func @transform_1(%arg0: i32) -> (i32, i32) {
    %c0_i32 = arith.constant 0 : i32
    %c0_i32_0 = arith.constant 0 : i32
    %c0_i32_1 = arith.constant 0 : i32
    return %c0_i32, %c0_i32_0 : i32, i32
  }
  func.func @transform_2(%arg0: i32) -> (i32, i32) {
    %c0_i32 = arith.constant 0 : i32
    %c0_i32_0 = arith.constant 0 : i32
    %c0_i32_1 = arith.constant 0 : i32
    return %c0_i32, %c0_i32_0 : i32, i32
  }
  func.func @transform_3(%arg0: i32) -> (i32, i32) {
    %c0_i32 = arith.constant 0 : i32
    %c0_i32_0 = arith.constant 0 : i32
    %c0_i32_1 = arith.constant 0 : i32
    return %c0_i32, %c0_i32_0 : i32, i32
  }
  func.func @transform_4(%arg0: i32) -> (i32, i32) {
    %c0_i32 = arith.constant 0 : i32
    %c0_i32_0 = arith.constant 0 : i32
    %c0_i32_1 = arith.constant 0 : i32
    return %c0_i32, %c0_i32_0 : i32, i32
  }
  func.func @transform_5(%arg0: i32) -> (i32, i32) {
    %c0_i32 = arith.constant 0 : i32
    %c0_i32_0 = arith.constant 0 : i32
    %c0_i32_1 = arith.constant 0 : i32
    return %c0_i32, %c0_i32_0 : i32, i32
  }
  func.func @transform_6(%arg0: i32) -> (i32, i32) {
    %c0_i32 = arith.constant 0 : i32
    %c0_i32_0 = arith.constant 0 : i32
    %c0_i32_1 = arith.constant 0 : i32
    return %c0_i32, %c0_i32_0 : i32, i32
  }
  func.func @transform_7(%arg0: i32) -> (i32, i32) {
    %c0_i32 = arith.constant 0 : i32
    %c0_i32_0 = arith.constant 0 : i32
    %c0_i32_1 = arith.constant 0 : i32
    return %c0_i32, %c0_i32_0 : i32, i32
  }
  func.func @transform_8(%arg0: i32) -> (i32, i32) {
    %c0_i32 = arith.constant 0 : i32
    %c0_i32_0 = arith.constant 0 : i32
    %c0_i32_1 = arith.constant 0 : i32
    return %c0_i32, %c0_i32_0 : i32, i32
  }
  func.func @transform_9(%arg0: i32) -> (i32, i32) {
    %c0_i32 = arith.constant 0 : i32
    %c0_i32_0 = arith.constant 0 : i32
    %c0_i32_1 = arith.constant 0 : i32
    return %c0_i32, %c0_i32_0 : i32, i32
  }
}

</mosaic_0001>

<llo_original>
// kernel: _bottleneck_se_pallas.1
$region0: #{_bottleneck_se_pallas.1}
  #allocation0 [shape = 'u32[]', space=smem, size = 0x4, offset = 0x4, fixed_abs, tag = 'smem constant byte address 0x4 - core index']
  #allocation1 [shape = 'u32[144,128]{1,0:T(1,128)}', space=vmem, size = 0x12000, scoped, tag = 'internal scratch']
  #allocation2 [shape = 'f32[8,546]{1,0:T(8,128)}', space=vmem, size = 0x5000, scoped, tag = 'scratch operand']
  %s0 = inlined_call_operand.vmem [shape: f32[4,512], index: 0, kind: input, shape index: {}]
  %s1 = inlined_call_operand.vmem [shape: f32[16,4], index: 1, kind: input, shape index: {}]
  %s2 = inlined_call_operand.vmem [shape: f32[8,9], index: 2, kind: input, shape index: {}]
  %s3 = inlined_call_operand.vmem [shape: f32[8,8], index: 3, kind: input, shape index: {}]
  %s4 = inlined_call_operand.vmem [shape: f32[8,2], index: 4, kind: input, shape index: {}]
  %s5 = inlined_call_operand.vmem [shape: f32[8,2], index: 5, kind: input, shape index: {}]
  %s6 = inlined_call_operand.vmem [shape: f32[1,2], index: 6, kind: input, shape index: {}]
  %s7 = inlined_call_operand.vmem [shape: f32[40,1], index: 7, kind: input, shape index: {}]
  %s8 = inlined_call_operand.vmem [shape: f32[9,512], index: 8, kind: input, shape index: {}]
  %s9 = inlined_call_operand.vmem [shape: f32[8,512], index: 9, kind: output, shape index: {}]
  %s10 = sld [smem:[#allocation0]]
  $region46: #{_bottleneck_se_pallas.1} parent=0
    _
  %s12 = ssub.s32 1, %s10
  %s13 = scalar_select 0, %s12, %s10
  // Predicated region
  $region2: #{_bottleneck_se_pallas.1} parent=0 // pred_check
    _
  $region3: #{_bottleneck_se_pallas.1} parent=0 // pred_check_branch
    %15 = sbr.rel (0) target = $region5
  $region4: #{_bottleneck_se_pallas.1} parent=0 // pred_region
    _
  $region5: #{_bottleneck_se_pallas.1} parent=0 // pred_fallthru
    _
  // Predicated region
  $region6: #{_bottleneck_se_pallas.1} parent=0 // pred_check
    _
  $region7: #{_bottleneck_se_pallas.1} parent=0 // pred_check_branch
    %17 = sbr.rel (0) target = $region9
  $region8: #{_bottleneck_se_pallas.1} parent=0 // pred_region
    _
  $region9: #{_bottleneck_se_pallas.1} parent=0 // pred_fallthru
    _
  // Predicated region
  $region10: #{_bottleneck_se_pallas.1} parent=0 // pred_check
    _
  $region11: #{_bottleneck_se_pallas.1} parent=0 // pred_check_branch
    %19 = sbr.rel (0) target = $region13
  $region12: #{_bottleneck_se_pallas.1} parent=0 // pred_region
    _
  $region13: #{_bottleneck_se_pallas.1} parent=0 // pred_fallthru
    _
  // Predicated region
  $region14: #{_bottleneck_se_pallas.1} parent=0 // pred_check
    _
  $region15: #{_bottleneck_se_pallas.1} parent=0 // pred_check_branch
    %21 = sbr.rel (0) target = $region17
  $region16: #{_bottleneck_se_pallas.1} parent=0 // pred_region
    _
  $region17: #{_bottleneck_se_pallas.1} parent=0 // pred_fallthru
    _
  // Predicated region
  $region18: #{_bottleneck_se_pallas.1} parent=0 // pred_check
    _
  $region19: #{_bottleneck_se_pallas.1} parent=0 // pred_check_branch
    %23 = sbr.rel (0) target = $region21
  $region20: #{_bottleneck_se_pallas.1} parent=0 // pred_region
    _
  $region21: #{_bottleneck_se_pallas.1} parent=0 // pred_fallthru
    _
  // Predicated region
  $region22: #{_bottleneck_se_pallas.1} parent=0 // pred_check
    _
  $region23: #{_bottleneck_se_pallas.1} parent=0 // pred_check_branch
    %25 = sbr.rel (0) target = $region25
  $region24: #{_bottleneck_se_pallas.1} parent=0 // pred_region
    _
  $region25: #{_bottleneck_se_pallas.1} parent=0 // pred_fallthru
    _
  // Predicated region
  $region26: #{_bottleneck_se_pallas.1} parent=0 // pred_check
    _
  $region27: #{_bottleneck_se_pallas.1} parent=0 // pred_check_branch
    %27 = sbr.rel (0) target = $region29
  $region28: #{_bottleneck_se_pallas.1} parent=0 // pred_region
    _
  $region29: #{_bottleneck_se_pallas.1} parent=0 // pred_fallthru
    _
  // Predicated region
  $region30: #{_bottleneck_se_pallas.1} parent=0 // pred_check
    _
  $region31: #{_bottleneck_se_pallas.1} parent=0 // pred_check_branch
    %29 = sbr.rel (0) target = $region33
  $region32: #{_bottleneck_se_pallas.1} parent=0 // pred_region
    _
  $region33: #{_bottleneck_se_pallas.1} parent=0 // pred_fallthru
    _
  // Predicated region
  $region34: #{_bottleneck_se_pallas.1} parent=0 // pred_check
    _
  $region35: #{_bottleneck_se_pallas.1} parent=0 // pred_check_branch
    %31 = sbr.rel (0) target = $region37
  $region36: #{_bottleneck_se_pallas.1} parent=0 // pred_region
    _
  $region37: #{_bottleneck_se_pallas.1} parent=0 // pred_fallthru
    _
  %v32 = vld [vmem:[%s0] sm:$0xff]
  %v33 = vld [vmem:[%s0 + $0x8] sm:$0xff]
  %v34 = vld [vmem:[%s1] sm:$0xff]
  %v35 = vld [vmem:[%s1 + $0x8] sm:$0xff]
  %v36 = vld [vmem:[%s7] sm:$0xff]
  %v37 = vld [vmem:[%s7 + $0x8] sm:$0xff]
  %39 = vset.pattern.permute.xlu0 0
  %40 = vperm.xlu0 %39, %v36
  %v41 = vpop.permute.xlu0 %40
  %44 = vset.pattern.permute.xlu0 0
  %45 = vperm.xlu0 %44, %v37
  %v46 = vpop.permute.xlu0 %45
  %v50 = vcombine.high %v32, %v32
  %v51 = vcombine.high %v33, %v33
  %vm52 = vcmask 31744
  %v54 = vsel %vm52, %v34, 0
  %v57 = vsel %vm52, %v35, 0
  %vm59 = vcmask 1043456
  %v60 = vsel %vm59, %v32, 0
  %v62 = vsel %vm59, %v50, 0
  %v64 = vsel %vm59, %v33, 0
  %v66 = vsel %vm59, %v51, 0
  %68 = vmatprep.subr.mxu0 %v62
  %69 = vmatpush1.msra.mxu0 %v60
  %70 = vmatprep.subr.mxu0 0.0
  %71 = vmatpush1.msra.mxu0 0.0
  %72 = vmatprep.subr.mxu0 0.0
  %73 = vmatpush1.msra.mxu0 0.0
  %74 = vmatprep.subr.mxu0 0.0
  %75 = vmatpush1.msra.mxu0 0.0
  %76 = vmatprep.subr.mxu0 0.0
  %77 = vmatpush1.msra.mxu0 0.0
  %78 = vmatprep.subr.mxu0 0.0
  %79 = vmatpush1.msra.mxu0 0.0
  %80 = vmatprep.subr.mxu0 0.0
  %81 = vmatpush1.msra.mxu0 0.0
  %82 = vmatprep.subr.mxu0 0.0
  %83 = vmatpush1.msra.mxu0 0.0
  %84 = vmatprep.subr.mxu0 0.0
  %85 = vmatpush1.msra.mxu0 0.0
  %86 = vmatprep.subr.mxu0 0.0
  %87 = vmatpush1.msra.mxu0 0.0
  %88 = vmatprep.subr.mxu0 0.0
  %89 = vmatpush1.msra.mxu0 0.0
  %90 = vmatprep.subr.mxu0 0.0
  %91 = vmatpush1.msra.mxu0 0.0
  %92 = vmatprep.subr.mxu0 0.0
  %93 = vmatpush1.msra.mxu0 0.0
  %94 = vmatprep.subr.mxu0 0.0
  %95 = vmatpush1.msra.mxu0 0.0
  %96 = vmatprep.subr.mxu0 0.0
  %97 = vmatpush1.msra.mxu0 0.0
  %98 = vmatprep.subr.mxu0 0.0
  %99 = vmatpush1.msra.mxu0 0.0
  %100 = vmatprep.subr.mxu0 0.0
  %101 = vmatpush1.msra.mxu0 0.0
  %102 = vmatprep.subr.mxu0 0.0
  %103 = vmatpush1.msra.mxu0 0.0
  %104 = vmatprep.subr.mxu0 0.0
  %105 = vmatpush1.msra.mxu0 0.0
  %106 = vmatprep.subr.mxu0 0.0
  %107 = vmatpush1.msra.mxu0 0.0
  %108 = vmatprep.subr.mxu0 0.0
  %109 = vmatpush1.msra.mxu0 0.0
  %110 = vmatprep.subr.mxu0 0.0
  %111 = vmatpush1.msra.mxu0 0.0
  %112 = vmatprep.subr.mxu0 0.0
  %113 = vmatpush1.msra.mxu0 0.0
  %114 = vmatprep.subr.mxu0 0.0
  %115 = vmatpush1.msra.mxu0 0.0
  %116 = vmatprep.subr.mxu0 0.0
  %117 = vmatpush1.msra.mxu0 0.0
  %118 = vmatprep.subr.mxu0 0.0
  %119 = vmatpush1.msra.mxu0 0.0
  %120 = vmatprep.subr.mxu0 0.0
  %121 = vmatpush1.msra.mxu0 0.0
  %122 = vmatprep.subr.mxu0 0.0
  %123 = vmatpush1.msra.mxu0 0.0
  %124 = vmatprep.subr.mxu0 0.0
  %125 = vmatpush1.msra.mxu0 0.0
  %126 = vmatprep.subr.mxu0 0.0
  %127 = vmatpush1.msra.mxu0 0.0
  %128 = vmatprep.subr.mxu0 0.0
  %129 = vmatpush1.msra.mxu0 0.0
  %130 = vmatprep.subr.mxu0 0.0
  %131 = vmatpush1.msra.mxu0 0.0
  %132 = vmatprep.mubr.f32.mxu0 0.0
  %133 = vmatmul.mubr.f32.gmra.mrb[0].mxu0 %v54
  %v134 = vpop.f32.mrb[0].mxu0
  %v135 = vadd.f32 %v41, %v134
  %v136 = vpop.f32.mrb[0].mxu0
  %v137 = vadd.f32 %v41, %v136
  %138 = vmatprep.mubr.f32.mxu0 0.0
  %139 = vmatmul.mubr.f32.gmra.mrb[0].mxu0 %v57
  %v140 = vpop.f32.mrb[0].mxu0
  %v141 = vadd.f32 %v46, %v140
  %v142 = vpop.f32.mrb[0].mxu0
  %v143 = vadd.f32 %v46, %v142
  %144 = vdwg.mxu0
  %145 = vmatprep.subr.mxu0 %v66
  %146 = vmatpush1.msra.mxu0 %v64
  %147 = vmatprep.subr.mxu0 0.0
  %148 = vmatpush1.msra.mxu0 0.0
  %149 = vmatprep.subr.mxu0 0.0
  %150 = vmatpush1.msra.mxu0 0.0
  %151 = vmatprep.subr.mxu0 0.0
  %152 = vmatpush1.msra.mxu0 0.0
  %153 = vmatprep.subr.mxu0 0.0
  %154 = vmatpush1.msra.mxu0 0.0
  %155 = vmatprep.subr.mxu0 0.0
  %156 = vmatpush1.msra.mxu0 0.0
  %157 = vmatprep.subr.mxu0 0.0
  %158 = vmatpush1.msra.mxu0 0.0
  %159 = vmatprep.subr.mxu0 0.0
  %160 = vmatpush1.msra.mxu0 0.0
  %161 = vmatprep.subr.mxu0 0.0
  %162 = vmatpush1.msra.mxu0 0.0
  %163 = vmatprep.subr.mxu0 0.0
  %164 = vmatpush1.msra.mxu0 0.0
  %165 = vmatprep.subr.mxu0 0.0
  %166 = vmatpush1.msra.mxu0 0.0
  %167 = vmatprep.subr.mxu0 0.0
  %168 = vmatpush1.msra.mxu0 0.0
  %169 = vmatprep.subr.mxu0 0.0
  %170 = vmatpush1.msra.mxu0 0.0
  %171 = vmatprep.subr.mxu0 0.0
  %172 = vmatpush1.msra.mxu0 0.0
  %173 = vmatprep.subr.mxu0 0.0
  %174 = vmatpush1.msra.mxu0 0.0
  %175 = vmatprep.subr.mxu0 0.0
  %176 = vmatpush1.msra.mxu0 0.0
  %177 = vmatprep.subr.mxu0 0.0
  %178 = vmatpush1.msra.mxu0 0.0
  %179 = vmatprep.subr.mxu0 0.0
  %180 = vmatpush1.msra.mxu0 0.0
  %181 = vmatprep.subr.mxu0 0.0
  %182 = vmatpush1.msra.mxu0 0.0
  %183 = vmatprep.subr.mxu0 0.0
  %184 = vmatpush1.msra.mxu0 0.0
  %185 = vmatprep.subr.mxu0 0.0
  %186 = vmatpush1.msra.mxu0 0.0
  %187 = vmatprep.subr.mxu0 0.0
  %188 = vmatpush1.msra.mxu0 0.0
  %189 = vmatprep.subr.mxu0 0.0
  %190 = vmatpush1.msra.mxu0 0.0
  %191 = vmatprep.subr.mxu0 0.0
  %192 = vmatpush1.msra.mxu0 0.0
  %193 = vmatprep.subr.mxu0 0.0
  %194 = vmatpush1.msra.mxu0 0.0
  %195 = vmatprep.subr.mxu0 0.0
  %196 = vmatpush1.msra.mxu0 0.0
  %197 = vmatprep.subr.mxu0 0.0
  %198 = vmatpush1.msra.mxu0 0.0
  %199 = vmatprep.subr.mxu0 0.0
  %200 = vmatpush1.msra.mxu0 0.0
  %201 = vmatprep.subr.mxu0 0.0
  %202 = vmatpush1.msra.mxu0 0.0
  %203 = vmatprep.subr.mxu0 0.0
  %204 = vmatpush1.msra.mxu0 0.0
  %205 = vmatprep.subr.mxu0 0.0
  %206 = vmatpush1.msra.mxu0 0.0
  %207 = vmatprep.subr.mxu0 0.0
  %208 = vmatpush1.msra.mxu0 0.0
  %209 = vmatprep.mubr.f32.mxu0 0.0
  %210 = vmatmul.mubr.f32.gmra.mrb[0].mxu0 %v54
  %v211 = vpop.f32.mrb[0].mxu0
  %v212 = vadd.f32 %v41, %v211
  %v213 = vpop.f32.mrb[0].mxu0
  %v214 = vadd.f32 %v41, %v213
  %215 = vmatprep.mubr.f32.mxu0 0.0
  %216 = vmatmul.mubr.f32.gmra.mrb[0].mxu0 %v57
  %v217 = vpop.f32.mrb[0].mxu0
  %v218 = vadd.f32 %v46, %v217
  %v219 = vpop.f32.mrb[0].mxu0
  %v220 = vadd.f32 %v46, %v219
  %221 = vdwg.mxu0
  %v222 = vadd.f32 %v135, 3.0
  %v223 = vadd.f32 %v137, 3.0
  %v224 = vadd.f32 %v212, 3.0
  %v225 = vadd.f32 %v214, 3.0
  %v226 = vmax.f32 %v222, 0.0
  %v227 = vmax.f32 %v223, 0.0
  %v228 = vmax.f32 %v224, 0.0
  %v229 = vmax.f32 %v225, 0.0
  %v230 = vmin.f32 %v226, 6.0
  %v231 = vmin.f32 %v227, 6.0
  %v232 = vmin.f32 %v228, 6.0
  %v233 = vmin.f32 %v229, 6.0
  %v234 = vmul.f32 %v135, %v230
  %v235 = vmul.f32 %v137, %v231
  %v236 = vmul.f32 %v212, %v232
  %v237 = vmul.f32 %v214, %v233
  %v238 = vmul.f32 %v234, 0.16666667
  %v239 = vmul.f32 %v235, 0.16666667
  %v240 = vmul.f32 %v236, 0.16666667
  %v241 = vmul.f32 %v237, 0.16666667
  %242 = vst [vmem:[#allocation2] sm:$0xff] 0.0
  %243 = vst [vmem:[#allocation2 + $0x8] sm:$0xff] 0.0
  %244 = vst [vmem:[#allocation2 + $0x10] sm:$0xff] 0.0
  %245 = vst [vmem:[#allocation2 + $0x18] sm:$0xff] 0.0
  %vm246 = vcmask 277504
  %247 = vst.msk [vmem:[#allocation2 + $0x20] sm:$0xff] %vm246, 0.0
  %252 = vrot.lane.b32.xlu0 %v238, 17
  %v253 = vpop.permute.xlu0 %252
  %254 = vrot.lane.b32.xlu0 %v239, 17
  %v255 = vpop.permute.xlu0 %254
  %256 = vrot.lane.b32.xlu0 %v240, 17
  %v257 = vpop.permute.xlu0 %256
  %258 = vrot.lane.b32.xlu0 %v241, 17
  %v259 = vpop.permute.xlu0 %258
  %vm260 = vcmask 138240
  %v261 = vsel %vm260, %v253, %v255
  %v262 = vsel %vm260, %v255, %v257
  %v263 = vsel %vm260, %v257, %v259
  %vm269 = vcmask 1047688
  %270 = vst.msk [vmem:[#allocation2] sm:$0xff] %vm269, %v253
  %271 = vst [vmem:[#allocation2 + $0x8] sm:$0xff] %v261
  %272 = vst [vmem:[#allocation2 + $0x10] sm:$0xff] %v262
  %273 = vst [vmem:[#allocation2 + $0x18] sm:$0xff] %v263
  %274 = vst.msk [vmem:[#allocation2 + $0x20] sm:$0xff] %vm260, %v259
  %v275 = vld [vmem:[#allocation2] sm:$0xff]
  %v276 = vld [vmem:[#allocation2 + $0x8] sm:$0xff]
  %v277 = vld [vmem:[#allocation2 + $0x10] sm:$0xff]
  %v278 = vld [vmem:[#allocation2 + $0x18] sm:$0xff]
  %v279 = vld [vmem:[%s2] sm:$0xff]
  %v280 = vld [vmem:[%s8] ss:$8 sm:$0xf]
  %282 = vset.pattern.permute.xlu0 0
  %283 = vperm.xlu0 %282, %v279
  %v284 = vpop.permute.xlu0 %283
  %v287 = vlaneseq
  %v288 = vshrl.u32 %v287, 7
  %v289 = vsub.s32 0, %v288
  %v290 = vrot.slane %v280, %v289
  %v291 = vlaneseq
  %v292 = vshrl.u32 %v291, 7
  %v293 = vsub.s32 1, %v292
  %v294 = vrot.slane %v280, %v293
  %v295 = vlaneseq
  %v296 = vshrl.u32 %v295, 7
  %v297 = vsub.s32 2, %v296
  %v298 = vrot.slane %v280, %v297
  %v299 = vlaneseq
  %v300 = vshrl.u32 %v299, 7
  %v301 = vsub.s32 3, %v300
  %v302 = vrot.slane %v280, %v301
  %v307 = vmul.f32 %v284, %v290
  %v308 = vmul.f32 %v284, %v294
  %v309 = vmul.f32 %v284, %v298
  %v310 = vmul.f32 %v284, %v302
  %v311 = vmul.f32 %v275, %v307
  %v312 = vmul.f32 %v276, %v308
  %v313 = vmul.f32 %v277, %v309
  %v314 = vmul.f32 %v278, %v310
  %v315 = vadd.f32 %v311, 0.0
  %v316 = vadd.f32 %v312, 0.0
  %v317 = vadd.f32 %v313, 0.0
  %v318 = vadd.f32 %v314, 0.0
  %v319 = vld [vmem:[#allocation2] sm:$0xff]
  %v320 = vld [vmem:[#allocation2 + $0x8] sm:$0xff]
  %v321 = vld [vmem:[#allocation2 + $0x10] sm:$0xff]
  %v322 = vld [vmem:[#allocation2 + $0x18] sm:$0xff]
  %v323 = vld [vmem:[#allocation2 + $0x20] sm:$0xff]
  %s324 = scalar_lea.vmem %s8, 1
  %v325 = vld [vmem:[%s324] ss:$8 sm:$0xf]
  %326 = vset.pattern.permute.xlu0 1
  %327 = vperm.xlu0 %326, %v279
  %v328 = vpop.permute.xlu0 %327
  %v331 = vlaneseq
  %v332 = vshrl.u32 %v331, 7
  %v333 = vsub.s32 0, %v332
  %v334 = vrot.slane %v325, %v333
  %v335 = vlaneseq
  %v336 = vshrl.u32 %v335, 7
  %v337 = vsub.s32 1, %v336
  %v338 = vrot.slane %v325, %v337
  %v339 = vlaneseq
  %v340 = vshrl.u32 %v339, 7
  %v341 = vsub.s32 2, %v340
  %v342 = vrot.slane %v325, %v341
  %v343 = vlaneseq
  %v344 = vshrl.u32 %v343, 7
  %v345 = vsub.s32 3, %v344
  %v346 = vrot.slane %v325, %v345
  %v351 = vmul.f32 %v328, %v334
  %v352 = vmul.f32 %v328, %v338
  %v353 = vmul.f32 %v328, %v342
  %v354 = vmul.f32 %v328, %v346
  %359 = vrot.lane.b32.xlu0 %v351, 1
  %v360 = vpop.permute.xlu0 %359
  %361 = vrot.lane.b32.xlu0 %v352, 1
  %v362 = vpop.permute.xlu0 %361
  %363 = vrot.lane.b32.xlu0 %v353, 1
  %v364 = vpop.permute.xlu0 %363
  %365 = vrot.lane.b32.xlu0 %v354, 1
  %v366 = vpop.permute.xlu0 %365
  %vm367 = vcmask 7168
  %v368 = vsel %vm367, %v360, %v362
  %v369 = vsel %vm367, %v362, %v364
  %v370 = vsel %vm367, %v364, %v366
  %v376 = vmul.f32 %v319, %v360
  %v377 = vmul.f32 %v320, %v368
  %v378 = vmul.f32 %v321, %v369
  %v379 = vmul.f32 %v322, %v370
  %v380 = vmul.f32 %v323, %v366
  %386 = vrot.lane.b32.xlu0 %v376, 127
  %v387 = vpop.permute.xlu0 %386
  %388 = vrot.lane.b32.xlu0 %v377, 127
  %v389 = vpop.permute.xlu0 %388
  %390 = vrot.lane.b32.xlu0 %v378, 127
  %v391 = vpop.permute.xlu0 %390
  %392 = vrot.lane.b32.xlu0 %v379, 127
  %v393 = vpop.permute.xlu0 %392
  %394 = vrot.lane.b32.xlu0 %v380, 127
  %v395 = vpop.permute.xlu0 %394
  %vm396 = vcmask 1039360
  %v397 = vsel %vm396, %v387, %v389
  %v398 = vsel %vm396, %v389, %v391
  %v399 = vsel %vm396, %v391, %v393
  %v400 = vsel %vm396, %v393, %v395
  %v405 = vadd.f32 %v315, %v397
  %v406 = vadd.f32 %v316, %v398
  %v407 = vadd.f32 %v317, %v399
  %v408 = vadd.f32 %v318, %v400
  %s409 = scalar_lea.vmem %s8, 2
  %v410 = vld [vmem:[%s409] ss:$8 sm:$0xf]
  %411 = vset.pattern.permute.xlu0 2
  %412 = vperm.xlu0 %411, %v279
  %v413 = vpop.permute.xlu0 %412
  %v416 = vlaneseq
  %v417 = vshrl.u32 %v416, 7
  %v418 = vsub.s32 0, %v417
  %v419 = vrot.slane %v410, %v418
  %v420 = vlaneseq
  %v421 = vshrl.u32 %v420, 7
  %v422 = vsub.s32 1, %v421
  %v423 = vrot.slane %v410, %v422
  %v424 = vlaneseq
  %v425 = vshrl.u32 %v424, 7
  %v426 = vsub.s32 2, %v425
  %v427 = vrot.slane %v410, %v426
  %v428 = vlaneseq
  %v429 = vshrl.u32 %v428, 7
  %v430 = vsub.s32 3, %v429
  %v431 = vrot.slane %v410, %v430
  %v436 = vmul.f32 %v413, %v419
  %v437 = vmul.f32 %v413, %v423
  %v438 = vmul.f32 %v413, %v427
  %v439 = vmul.f32 %v413, %v431
  %444 = vrot.lane.b32.xlu0 %v436, 2
  %v445 = vpop.permute.xlu0 %444
  %446 = vrot.lane.b32.xlu0 %v437, 2
  %v447 = vpop.permute.xlu0 %446
  %448 = vrot.lane.b32.xlu0 %v438, 2
  %v449 = vpop.permute.xlu0 %448
  %450 = vrot.lane.b32.xlu0 %v439, 2
  %v451 = vpop.permute.xlu0 %450
  %vm452 = vcmask 15360
  %v453 = vsel %vm452, %v445, %v447
  %v454 = vsel %vm452, %v447, %v449
  %v455 = vsel %vm452, %v449, %v451
  %v461 = vmul.f32 %v319, %v445
  %v462 = vmul.f32 %v320, %v453
  %v463 = vmul.f32 %v321, %v454
  %v464 = vmul.f32 %v322, %v455
  %v465 = vmul.f32 %v323, %v451
  %471 = vrot.lane.b32.xlu0 %v461, 126
  %v472 = vpop.permute.xlu0 %471
  %473 = vrot.lane.b32.xlu0 %v462, 126
  %v474 = vpop.permute.xlu0 %473
  %475 = vrot.lane.b32.xlu0 %v463, 126
  %v476 = vpop.permute.xlu0 %475
  %477 = vrot.lane.b32.xlu0 %v464, 126
  %v478 = vpop.permute.xlu0 %477
  %479 = vrot.lane.b32.xlu0 %v465, 126
  %v480 = vpop.permute.xlu0 %479
  %vm481 = vcmask 1031168
  %v482 = vsel %vm481, %v472, %v474
  %v483 = vsel %vm481, %v474, %v476
  %v484 = vsel %vm481, %v476, %v478
  %v485 = vsel %vm481, %v478, %v480
  %v490 = vadd.f32 %v405, %v482
  %v491 = vadd.f32 %v406, %v483
  %v492 = vadd.f32 %v407, %v484
  %v493 = vadd.f32 %v408, %v485
  %s494 = scalar_lea.vmem %s8, 3
  %v495 = vld [vmem:[%s494] ss:$8 sm:$0xf]
  %496 = vset.pattern.permute.xlu0 3
  %497 = vperm.xlu0 %496, %v279
  %v498 = vpop.permute.xlu0 %497
  %v501 = vlaneseq
  %v502 = vshrl.u32 %v501, 7
  %v503 = vsub.s32 0, %v502
  %v504 = vrot.slane %v495, %v503
  %v505 = vlaneseq
  %v506 = vshrl.u32 %v505, 7
  %v507 = vsub.s32 1, %v506
  %v508 = vrot.slane %v495, %v507
  %v509 = vlaneseq
  %v510 = vshrl.u32 %v509, 7
  %v511 = vsub.s32 2, %v510
  %v512 = vrot.slane %v495, %v511
  %v513 = vlaneseq
  %v514 = vshrl.u32 %v513, 7
  %v515 = vsub.s32 3, %v514
  %v516 = vrot.slane %v495, %v515
  %v521 = vmul.f32 %v498, %v504
  %v522 = vmul.f32 %v498, %v508
  %v523 = vmul.f32 %v498, %v512
  %v524 = vmul.f32 %v498, %v516
  %529 = vrot.lane.b32.xlu0 %v521, 16
  %v530 = vpop.permute.xlu0 %529
  %531 = vrot.lane.b32.xlu0 %v522, 16
  %v532 = vpop.permute.xlu0 %531
  %533 = vrot.lane.b32.xlu0 %v523, 16
  %v534 = vpop.permute.xlu0 %533
  %535 = vrot.lane.b32.xlu0 %v524, 16
  %v536 = vpop.permute.xlu0 %535
  %vm537 = vcmask 130048
  %v538 = vsel %vm537, %v530, %v532
  %v539 = vsel %vm537, %v532, %v534
  %v540 = vsel %vm537, %v534, %v536
  %v546 = vmul.f32 %v319, %v530
  %v547 = vmul.f32 %v320, %v538
  %v548 = vmul.f32 %v321, %v539
  %v549 = vmul.f32 %v322, %v540
  %v550 = vmul.f32 %v323, %v536
  %556 = vrot.lane.b32.xlu0 %v546, 112
  %v557 = vpop.permute.xlu0 %556
  %558 = vrot.lane.b32.xlu0 %v547, 112
  %v559 = vpop.permute.xlu0 %558
  %560 = vrot.lane.b32.xlu0 %v548, 112
  %v561 = vpop.permute.xlu0 %560
  %562 = vrot.lane.b32.xlu0 %v549, 112
  %v563 = vpop.permute.xlu0 %562
  %564 = vrot.lane.b32.xlu0 %v550, 112
  %v565 = vpop.permute.xlu0 %564
  %vm566 = vcmask 916480
  %v567 = vsel %vm566, %v557, %v559
  %v568 = vsel %vm566, %v559, %v561
  %v569 = vsel %vm566, %v561, %v563
  %v570 = vsel %vm566, %v563, %v565
  %v575 = vadd.f32 %v490, %v567
  %v576 = vadd.f32 %v491, %v568
  %v577 = vadd.f32 %v492, %v569
  %v578 = vadd.f32 %v493, %v570
  %s579 = scalar_lea.vmem %s8, 4
  %v580 = vld [vmem:[%s579] ss:$8 sm:$0xf]
  %581 = vset.pattern.permute.xlu0 4
  %582 = vperm.xlu0 %581, %v279
  %v583 = vpop.permute.xlu0 %582
  %v586 = vlaneseq
  %v587 = vshrl.u32 %v586, 7
  %v588 = vsub.s32 0, %v587
  %v589 = vrot.slane %v580, %v588
  %v590 = vlaneseq
  %v591 = vshrl.u32 %v590, 7
  %v592 = vsub.s32 1, %v591
  %v593 = vrot.slane %v580, %v592
  %v594 = vlaneseq
  %v595 = vshrl.u32 %v594, 7
  %v596 = vsub.s32 2, %v595
  %v597 = vrot.slane %v580, %v596
  %v598 = vlaneseq
  %v599 = vshrl.u32 %v598, 7
  %v600 = vsub.s32 3, %v599
  %v601 = vrot.slane %v580, %v600
  %v606 = vmul.f32 %v583, %v589
  %v607 = vmul.f32 %v583, %v593
  %v608 = vmul.f32 %v583, %v597
  %v609 = vmul.f32 %v583, %v601
  %614 = vrot.lane.b32.xlu0 %v606, 17
  %v615 = vpop.permute.xlu0 %614
  %616 = vrot.lane.b32.xlu0 %v607, 17
  %v617 = vpop.permute.xlu0 %616
  %618 = vrot.lane.b32.xlu0 %v608, 17
  %v619 = vpop.permute.xlu0 %618
  %620 = vrot.lane.b32.xlu0 %v609, 17
  %v621 = vpop.permute.xlu0 %620
  %v622 = vsel %vm260, %v615, %v617
  %v623 = vsel %vm260, %v617, %v619
  %v624 = vsel %vm260, %v619, %v621
  %v630 = vmul.f32 %v319, %v615
  %v631 = vmul.f32 %v320, %v622
  %v632 = vmul.f32 %v321, %v623
  %v633 = vmul.f32 %v322, %v624
  %v634 = vmul.f32 %v323, %v621
  %640 = vrot.lane.b32.xlu0 %v630, 111
  %v641 = vpop.permute.xlu0 %640
  %642 = vrot.lane.b32.xlu0 %v631, 111
  %v643 = vpop.permute.xlu0 %642
  %644 = vrot.lane.b32.xlu0 %v632, 111
  %v645 = vpop.permute.xlu0 %644
  %646 = vrot.lane.b32.xlu0 %v633, 111
  %v647 = vpop.permute.xlu0 %646
  %648 = vrot.lane.b32.xlu0 %v634, 111
  %v649 = vpop.permute.xlu0 %648
  %vm650 = vcmask 908288
  %v651 = vsel %vm650, %v641, %v643
  %v652 = vsel %vm650, %v643, %v645
  %v653 = vsel %vm650, %v645, %v647
  %v654 = vsel %vm650, %v647, %v649
  %v659 = vadd.f32 %v575, %v651
  %v660 = vadd.f32 %v576, %v652
  %v661 = vadd.f32 %v577, %v653
  %v662 = vadd.f32 %v578, %v654
  %s663 = scalar_lea.vmem %s8, 5
  %v664 = vld [vmem:[%s663] ss:$8 sm:$0xf]
  %665 = vset.pattern.permute.xlu0 5
  %666 = vperm.xlu0 %665, %v279
  %v667 = vpop.permute.xlu0 %666
  %v670 = vlaneseq
  %v671 = vshrl.u32 %v670, 7
  %v672 = vsub.s32 0, %v671
  %v673 = vrot.slane %v664, %v672
  %v674 = vlaneseq
  %v675 = vshrl.u32 %v674, 7
  %v676 = vsub.s32 1, %v675
  %v677 = vrot.slane %v664, %v676
  %v678 = vlaneseq
  %v679 = vshrl.u32 %v678, 7
  %v680 = vsub.s32 2, %v679
  %v681 = vrot.slane %v664, %v680
  %v682 = vlaneseq
  %v683 = vshrl.u32 %v682, 7
  %v684 = vsub.s32 3, %v683
  %v685 = vrot.slane %v664, %v684
  %v690 = vmul.f32 %v667, %v673
  %v691 = vmul.f32 %v667, %v677
  %v692 = vmul.f32 %v667, %v681
  %v693 = vmul.f32 %v667, %v685
  %698 = vrot.lane.b32.xlu0 %v690, 18
  %v699 = vpop.permute.xlu0 %698
  %700 = vrot.lane.b32.xlu0 %v691, 18
  %v701 = vpop.permute.xlu0 %700
  %702 = vrot.lane.b32.xlu0 %v692, 18
  %v703 = vpop.permute.xlu0 %702
  %704 = vrot.lane.b32.xlu0 %v693, 18
  %v705 = vpop.permute.xlu0 %704
  %vm706 = vcmask 146432
  %v707 = vsel %vm706, %v699, %v701
  %v708 = vsel %vm706, %v701, %v703
  %v709 = vsel %vm706, %v703, %v705
  %v715 = vmul.f32 %v319, %v699
  %v716 = vmul.f32 %v320, %v707
  %v717 = vmul.f32 %v321, %v708
  %v718 = vmul.f32 %v322, %v709
  %v719 = vmul.f32 %v323, %v705
  %725 = vrot.lane.b32.xlu0 %v715, 110
  %v726 = vpop.permute.xlu0 %725
  %727 = vrot.lane.b32.xlu0 %v716, 110
  %v728 = vpop.permute.xlu0 %727
  %729 = vrot.lane.b32.xlu0 %v717, 110
  %v730 = vpop.permute.xlu0 %729
  %731 = vrot.lane.b32.xlu0 %v718, 110
  %v732 = vpop.permute.xlu0 %731
  %733 = vrot.lane.b32.xlu0 %v719, 110
  %v734 = vpop.permute.xlu0 %733
  %vm735 = vcmask 900096
  %v736 = vsel %vm735, %v726, %v728
  %v737 = vsel %vm735, %v728, %v730
  %v738 = vsel %vm735, %v730, %v732
  %v739 = vsel %vm735, %v732, %v734
  %v744 = vadd.f32 %v659, %v736
  %v745 = vadd.f32 %v660, %v737
  %v746 = vadd.f32 %v661, %v738
  %v747 = vadd.f32 %v662, %v739
  %s748 = scalar_lea.vmem %s8, 6
  %v749 = vld [vmem:[%s748] ss:$8 sm:$0xf]
  %750 = vset.pattern.permute.xlu0 6
  %751 = vperm.xlu0 %750, %v279
  %v752 = vpop.permute.xlu0 %751
  %v755 = vlaneseq
  %v756 = vshrl.u32 %v755, 7
  %v757 = vsub.s32 0, %v756
  %v758 = vrot.slane %v749, %v757
  %v759 = vlaneseq
  %v760 = vshrl.u32 %v759, 7
  %v761 = vsub.s32 1, %v760
  %v762 = vrot.slane %v749, %v761
  %v763 = vlaneseq
  %v764 = vshrl.u32 %v763, 7
  %v765 = vsub.s32 2, %v764
  %v766 = vrot.slane %v749, %v765
  %v767 = vlaneseq
  %v768 = vshrl.u32 %v767, 7
  %v769 = vsub.s32 3, %v768
  %v770 = vrot.slane %v749, %v769
  %v775 = vmul.f32 %v752, %v758
  %v776 = vmul.f32 %v752, %v762
  %v777 = vmul.f32 %v752, %v766
  %v778 = vmul.f32 %v752, %v770
  %783 = vrot.lane.b32.xlu0 %v775, 32
  %v784 = vpop.permute.xlu0 %783
  %785 = vrot.lane.b32.xlu0 %v776, 32
  %v786 = vpop.permute.xlu0 %785
  %787 = vrot.lane.b32.xlu0 %v777, 32
  %v788 = vpop.permute.xlu0 %787
  %789 = vrot.lane.b32.xlu0 %v778, 32
  %v790 = vpop.permute.xlu0 %789
  %vm791 = vcmask 261120
  %v792 = vsel %vm791, %v784, %v786
  %v793 = vsel %vm791, %v786, %v788
  %v794 = vsel %vm791, %v788, %v790
  %v800 = vmul.f32 %v319, %v784
  %v801 = vmul.f32 %v320, %v792
  %v802 = vmul.f32 %v321, %v793
  %v803 = vmul.f32 %v322, %v794
  %v804 = vmul.f32 %v323, %v790
  %810 = vrot.lane.b32.xlu0 %v800, 96
  %v811 = vpop.permute.xlu0 %810
  %812 = vrot.lane.b32.xlu0 %v801, 96
  %v813 = vpop.permute.xlu0 %812
  %814 = vrot.lane.b32.xlu0 %v802, 96
  %v815 = vpop.permute.xlu0 %814
  %816 = vrot.lane.b32.xlu0 %v803, 96
  %v817 = vpop.permute.xlu0 %816
  %818 = vrot.lane.b32.xlu0 %v804, 96
  %v819 = vpop.permute.xlu0 %818
  %vm820 = vcmask 785408
  %v821 = vsel %vm820, %v811, %v813
  %v822 = vsel %vm820, %v813, %v815
  %v823 = vsel %vm820, %v815, %v817
  %v824 = vsel %vm820, %v817, %v819
  %v829 = vadd.f32 %v744, %v821
  %v830 = vadd.f32 %v745, %v822
  %v831 = vadd.f32 %v746, %v823
  %v832 = vadd.f32 %v747, %v824
  %s833 = scalar_lea.vmem %s8, 7
  %v834 = vld [vmem:[%s833] ss:$8 sm:$0xf]
  %835 = vset.pattern.permute.xlu0 7
  %836 = vperm.xlu0 %835, %v279
  %v837 = vpop.permute.xlu0 %836
  %v840 = vlaneseq
  %v841 = vshrl.u32 %v840, 7
  %v842 = vsub.s32 0, %v841
  %v843 = vrot.slane %v834, %v842
  %v844 = vlaneseq
  %v845 = vshrl.u32 %v844, 7
  %v846 = vsub.s32 1, %v845
  %v847 = vrot.slane %v834, %v846
  %v848 = vlaneseq
  %v849 = vshrl.u32 %v848, 7
  %v850 = vsub.s32 2, %v849
  %v851 = vrot.slane %v834, %v850
  %v852 = vlaneseq
  %v853 = vshrl.u32 %v852, 7
  %v854 = vsub.s32 3, %v853
  %v855 = vrot.slane %v834, %v854
  %v860 = vmul.f32 %v837, %v843
  %v861 = vmul.f32 %v837, %v847
  %v862 = vmul.f32 %v837, %v851
  %v863 = vmul.f32 %v837, %v855
  %868 = vrot.lane.b32.xlu0 %v860, 33
  %v869 = vpop.permute.xlu0 %868
  %870 = vrot.lane.b32.xlu0 %v861, 33
  %v871 = vpop.permute.xlu0 %870
  %872 = vrot.lane.b32.xlu0 %v862, 33
  %v873 = vpop.permute.xlu0 %872
  %874 = vrot.lane.b32.xlu0 %v863, 33
  %v875 = vpop.permute.xlu0 %874
  %vm876 = vcmask 269312
  %v877 = vsel %vm876, %v869, %v871
  %v878 = vsel %vm876, %v871, %v873
  %v879 = vsel %vm876, %v873, %v875
  %v885 = vmul.f32 %v319, %v869
  %v886 = vmul.f32 %v320, %v877
  %v887 = vmul.f32 %v321, %v878
  %v888 = vmul.f32 %v322, %v879
  %v889 = vmul.f32 %v323, %v875
  %895 = vrot.lane.b32.xlu0 %v885, 95
  %v896 = vpop.permute.xlu0 %895
  %897 = vrot.lane.b32.xlu0 %v886, 95
  %v898 = vpop.permute.xlu0 %897
  %899 = vrot.lane.b32.xlu0 %v887, 95
  %v900 = vpop.permute.xlu0 %899
  %901 = vrot.lane.b32.xlu0 %v888, 95
  %v902 = vpop.permute.xlu0 %901
  %903 = vrot.lane.b32.xlu0 %v889, 95
  %v904 = vpop.permute.xlu0 %903
  %vm905 = vcmask 777216
  %v906 = vsel %vm905, %v896, %v898
  %v907 = vsel %vm905, %v898, %v900
  %v908 = vsel %vm905, %v900, %v902
  %v909 = vsel %vm905, %v902, %v904
  %v914 = vadd.f32 %v829, %v906
  %v915 = vadd.f32 %v830, %v907
  %v916 = vadd.f32 %v831, %v908
  %v917 = vadd.f32 %v832, %v909
  %s918 = scalar_lea.vmem %s8, 32
  %v919 = vld [vmem:[%s918] ss:$8 sm:$0xf]
  %920 = vset.pattern.permute.xlu0 8
  %921 = vperm.xlu0 %920, %v279
  %v922 = vpop.permute.xlu0 %921
  %v925 = vlaneseq
  %v926 = vshrl.u32 %v925, 7
  %v927 = vsub.s32 0, %v926
  %v928 = vrot.slane %v919, %v927
  %v929 = vlaneseq
  %v930 = vshrl.u32 %v929, 7
  %v931 = vsub.s32 1, %v930
  %v932 = vrot.slane %v919, %v931
  %v933 = vlaneseq
  %v934 = vshrl.u32 %v933, 7
  %v935 = vsub.s32 2, %v934
  %v936 = vrot.slane %v919, %v935
  %v937 = vlaneseq
  %v938 = vshrl.u32 %v937, 7
  %v939 = vsub.s32 3, %v938
  %v940 = vrot.slane %v919, %v939
  %v945 = vmul.f32 %v922, %v928
  %v946 = vmul.f32 %v922, %v932
  %v947 = vmul.f32 %v922, %v936
  %v948 = vmul.f32 %v922, %v940
  %953 = vrot.lane.b32.xlu0 %v945, 34
  %v954 = vpop.permute.xlu0 %953
  %955 = vrot.lane.b32.xlu0 %v946, 34
  %v956 = vpop.permute.xlu0 %955
  %957 = vrot.lane.b32.xlu0 %v947, 34
  %v958 = vpop.permute.xlu0 %957
  %959 = vrot.lane.b32.xlu0 %v948, 34
  %v960 = vpop.permute.xlu0 %959
  %v961 = vsel %vm246, %v954, %v956
  %v962 = vsel %vm246, %v956, %v958
  %v963 = vsel %vm246, %v958, %v960
  %v969 = vmul.f32 %v319, %v954
  %v970 = vmul.f32 %v320, %v961
  %v971 = vmul.f32 %v321, %v962
  %v972 = vmul.f32 %v322, %v963
  %v973 = vmul.f32 %v323, %v960
  %979 = vrot.lane.b32.xlu0 %v969, 94
  %v980 = vpop.permute.xlu0 %979
  %981 = vrot.lane.b32.xlu0 %v970, 94
  %v982 = vpop.permute.xlu0 %981
  %983 = vrot.lane.b32.xlu0 %v971, 94
  %v984 = vpop.permute.xlu0 %983
  %985 = vrot.lane.b32.xlu0 %v972, 94
  %v986 = vpop.permute.xlu0 %985
  %987 = vrot.lane.b32.xlu0 %v973, 94
  %v988 = vpop.permute.xlu0 %987
  %vm989 = vcmask 769024
  %v990 = vsel %vm989, %v980, %v982
  %v991 = vsel %vm989, %v982, %v984
  %v992 = vsel %vm989, %v984, %v986
  %v993 = vsel %vm989, %v986, %v988
  %v998 = vadd.f32 %v914, %v990
  %v999 = vadd.f32 %v915, %v991
  %v1000 = vadd.f32 %v916, %v992
  %v1001 = vadd.f32 %v917, %v993
  %v1002 = vld [vmem:[%s7 + $0x10] sm:$0xff]
  %1004 = vset.pattern.permute.xlu0 0
  %1005 = vperm.xlu0 %1004, %v1002
  %v1006 = vpop.permute.xlu0 %1005
  %v1008 = vadd.f32 %v998, %v1006
  %v1009 = vadd.f32 %v999, %v1006
  %v1010 = vadd.f32 %v1000, %v1006
  %v1011 = vadd.f32 %v1001, %v1006
  %v1012 = vadd.f32 %v1008, 3.0
  %v1013 = vadd.f32 %v1009, 3.0
  %v1014 = vadd.f32 %v1010, 3.0
  %v1015 = vadd.f32 %v1011, 3.0
  %v1016 = vmax.f32 %v1012, 0.0
  %v1017 = vmax.f32 %v1013, 0.0
  %v1018 = vmax.f32 %v1014, 0.0
  %v1019 = vmax.f32 %v1015, 0.0
  %v1020 = vmin.f32 %v1016, 6.0
  %v1021 = vmin.f32 %v1017, 6.0
  %v1022 = vmin.f32 %v1018, 6.0
  %v1023 = vmin.f32 %v1019, 6.0
  %v1024 = vmul.f32 %v1008, %v1020
  %v1025 = vmul.f32 %v1009, %v1021
  %v1026 = vmul.f32 %v1010, %v1022
  %v1027 = vmul.f32 %v1011, %v1023
  %v1028 = vmul.f32 %v1024, 0.16666667
  %v1029 = vmul.f32 %v1025, 0.16666667
  %v1030 = vmul.f32 %v1026, 0.16666667
  %v1031 = vmul.f32 %v1027, 0.16666667
  %v1032 = vld [vmem:[%s3] sm:$0xff]
  %v1033 = vld [vmem:[%s7 + $0x18] sm:$0xff]
  %1035 = vset.pattern.permute.xlu0 0
  %1036 = vperm.xlu0 %1035, %v1033
  %v1037 = vpop.permute.xlu0 %1036
  %vm1039 = vcmask 64512
  %v1041 = vsel %vm1039, %v1032, 0
  %1043 = vmatprep.subr.mxu0 %v1029
  %1044 = vmatpush1.msra.mxu0 %v1028
  %1045 = vmatprep.subr.mxu0 0.0
  %1046 = vmatpush1.msra.mxu0 0.0
  %1047 = vmatprep.subr.mxu0 0.0
  %1048 = vmatpush1.msra.mxu0 0.0
  %1049 = vmatprep.subr.mxu0 0.0
  %1050 = vmatpush1.msra.mxu0 0.0
  %1051 = vmatprep.subr.mxu0 0.0
  %1052 = vmatpush1.msra.mxu0 0.0
  %1053 = vmatprep.subr.mxu0 0.0
  %1054 = vmatpush1.msra.mxu0 0.0
  %1055 = vmatprep.subr.mxu0 0.0
  %1056 = vmatpush1.msra.mxu0 0.0
  %1057 = vmatprep.subr.mxu0 0.0
  %1058 = vmatpush1.msra.mxu0 0.0
  %1059 = vmatprep.subr.mxu0 0.0
  %1060 = vmatpush1.msra.mxu0 0.0
  %1061 = vmatprep.subr.mxu0 0.0
  %1062 = vmatpush1.msra.mxu0 0.0
  %1063 = vmatprep.subr.mxu0 0.0
  %1064 = vmatpush1.msra.mxu0 0.0
  %1065 = vmatprep.subr.mxu0 0.0
  %1066 = vmatpush1.msra.mxu0 0.0
  %1067 = vmatprep.subr.mxu0 0.0
  %1068 = vmatpush1.msra.mxu0 0.0
  %1069 = vmatprep.subr.mxu0 0.0
  %1070 = vmatpush1.msra.mxu0 0.0
  %1071 = vmatprep.subr.mxu0 0.0
  %1072 = vmatpush1.msra.mxu0 0.0
  %1073 = vmatprep.subr.mxu0 0.0
  %1074 = vmatpush1.msra.mxu0 0.0
  %1075 = vmatprep.subr.mxu0 0.0
  %1076 = vmatpush1.msra.mxu0 0.0
  %1077 = vmatprep.subr.mxu0 0.0
  %1078 = vmatpush1.msra.mxu0 0.0
  %1079 = vmatprep.subr.mxu0 0.0
  %1080 = vmatpush1.msra.mxu0 0.0
  %1081 = vmatprep.subr.mxu0 0.0
  %1082 = vmatpush1.msra.mxu0 0.0
  %1083 = vmatprep.subr.mxu0 0.0
  %1084 = vmatpush1.msra.mxu0 0.0
  %1085 = vmatprep.subr.mxu0 0.0
  %1086 = vmatpush1.msra.mxu0 0.0
  %1087 = vmatprep.subr.mxu0 0.0
  %1088 = vmatpush1.msra.mxu0 0.0
  %1089 = vmatprep.subr.mxu0 0.0
  %1090 = vmatpush1.msra.mxu0 0.0
  %1091 = vmatprep.subr.mxu0 0.0
  %1092 = vmatpush1.msra.mxu0 0.0
  %1093 = vmatprep.subr.mxu0 0.0
  %1094 = vmatpush1.msra.mxu0 0.0
  %1095 = vmatprep.subr.mxu0 0.0
  %1096 = vmatpush1.msra.mxu0 0.0
  %1097 = vmatprep.subr.mxu0 0.0
  %1098 = vmatpush1.msra.mxu0 0.0
  %1099 = vmatprep.subr.mxu0 0.0
  %1100 = vmatpush1.msra.mxu0 0.0
  %1101 = vmatprep.subr.mxu0 0.0
  %1102 = vmatpush1.msra.mxu0 0.0
  %1103 = vmatprep.subr.mxu0 0.0
  %1104 = vmatpush1.msra.mxu0 0.0
  %1105 = vmatprep.subr.mxu0 0.0
  %1106 = vmatpush1.msra.mxu0 0.0
  %1107 = vmatprep.mubr.f32.mxu0 0.0
  %1108 = vmatmul.mubr.f32.gmra.mrb[0].mxu0 %v1041
  %v1109 = vpop.f32.mrb[0].mxu0
  %v1110 = vadd.f32 %v1037, %v1109
  %v1111 = vpop.f32.mrb[0].mxu0
  %v1112 = vadd.f32 %v1037, %v1111
  %1113 = vdwg.mxu0
  %1114 = vmatprep.subr.mxu0 %v1031
  %1115 = vmatpush1.msra.mxu0 %v1030
  %1116 = vmatprep.subr.mxu0 0.0
  %1117 = vmatpush1.msra.mxu0 0.0
  %1118 = vmatprep.subr.mxu0 0.0
  %1119 = vmatpush1.msra.mxu0 0.0
  %1120 = vmatprep.subr.mxu0 0.0
  %1121 = vmatpush1.msra.mxu0 0.0
  %1122 = vmatprep.subr.mxu0 0.0
  %1123 = vmatpush1.msra.mxu0 0.0
  %1124 = vmatprep.subr.mxu0 0.0
  %1125 = vmatpush1.msra.mxu0 0.0
  %1126 = vmatprep.subr.mxu0 0.0
  %1127 = vmatpush1.msra.mxu0 0.0
  %1128 = vmatprep.subr.mxu0 0.0
  %1129 = vmatpush1.msra.mxu0 0.0
  %1130 = vmatprep.subr.mxu0 0.0
  %1131 = vmatpush1.msra.mxu0 0.0
  %1132 = vmatprep.subr.mxu0 0.0
  %1133 = vmatpush1.msra.mxu0 0.0
  %1134 = vmatprep.subr.mxu0 0.0
  %1135 = vmatpush1.msra.mxu0 0.0
  %1136 = vmatprep.subr.mxu0 0.0
  %1137 = vmatpush1.msra.mxu0 0.0
  %1138 = vmatprep.subr.mxu0 0.0
  %1139 = vmatpush1.msra.mxu0 0.0
  %1140 = vmatprep.subr.mxu0 0.0
  %1141 = vmatpush1.msra.mxu0 0.0
  %1142 = vmatprep.subr.mxu0 0.0
  %1143 = vmatpush1.msra.mxu0 0.0
  %1144 = vmatprep.subr.mxu0 0.0
  %1145 = vmatpush1.msra.mxu0 0.0
  %1146 = vmatprep.subr.mxu0 0.0
  %1147 = vmatpush1.msra.mxu0 0.0
  %1148 = vmatprep.subr.mxu0 0.0
  %1149 = vmatpush1.msra.mxu0 0.0
  %1150 = vmatprep.subr.mxu0 0.0
  %1151 = vmatpush1.msra.mxu0 0.0
  %1152 = vmatprep.subr.mxu0 0.0
  %1153 = vmatpush1.msra.mxu0 0.0
  %1154 = vmatprep.subr.mxu0 0.0
  %1155 = vmatpush1.msra.mxu0 0.0
  %1156 = vmatprep.subr.mxu0 0.0
  %1157 = vmatpush1.msra.mxu0 0.0
  %1158 = vmatprep.subr.mxu0 0.0
  %1159 = vmatpush1.msra.mxu0 0.0
  %1160 = vmatprep.subr.mxu0 0.0
  %1161 = vmatpush1.msra.mxu0 0.0
  %1162 = vmatprep.subr.mxu0 0.0
  %1163 = vmatpush1.msra.mxu0 0.0
  %1164 = vmatprep.subr.mxu0 0.0
  %1165 = vmatpush1.msra.mxu0 0.0
  %1166 = vmatprep.subr.mxu0 0.0
  %1167 = vmatpush1.msra.mxu0 0.0
  %1168 = vmatprep.subr.mxu0 0.0
  %1169 = vmatpush1.msra.mxu0 0.0
  %1170 = vmatprep.subr.mxu0 0.0
  %1171 = vmatpush1.msra.mxu0 0.0
  %1172 = vmatprep.subr.mxu0 0.0
  %1173 = vmatpush1.msra.mxu0 0.0
  %1174 = vmatprep.subr.mxu0 0.0
  %1175 = vmatpush1.msra.mxu0 0.0
  %1176 = vmatprep.subr.mxu0 0.0
  %1177 = vmatpush1.msra.mxu0 0.0
  %1178 = vmatprep.mubr.f32.mxu0 0.0
  %1179 = vmatmul.mubr.f32.gmra.mrb[0].mxu0 %v1041
  %v1180 = vpop.f32.mrb[0].mxu0
  %v1181 = vadd.f32 %v1037, %v1180
  %v1182 = vpop.f32.mrb[0].mxu0
  %v1183 = vadd.f32 %v1037, %v1182
  %1184 = vdwg.mxu0
  %v1185 = vld [vmem:[%s7 + $0x20] sm:$0xff]
  %v1186 = vadd.f32 %v1110, %v1112
  %1187 = vadd.xlane.f32.xlu0 %v1186
  %v1188 = vpop.xlane.xlu0 %1187
  %v1189 = vrcp.pop 256.0
  %v1190 = vmul.f32 %v1188, %v1189
  %v1191 = vld [vmem:[%s4] sm:$0xff]
  %v1192 = vmul.f32 %v1191, %v1190
  %v1193 = vsel %vm452, %v1192, 0.0
  %v1194 = vrot.slane %v1193, 4
  %v1195 = vadd.f32 %v1193, %v1194
  %v1196 = vrot.slane %v1195, 2
  %v1197 = vadd.f32 %v1195, %v1196
  %v1198 = vrot.slane %v1197, 1
  %v1199 = vadd.f32 %v1197, %v1198
  %v1200 = vld [vmem:[%s6] sm:$0x1]
  %v1201 = vadd.f32 %v1199, %v1200
  %v1202 = vmax.f32 %v1201, 0.0
  %v1203 = vld [vmem:[%s5] sm:$0xff]
  %v1204 = vlaneseq
  %v1205 = vshrl.u32 %v1204, 7
  %v1206 = vsub.s32 0, %v1205
  %v1207 = vrot.slane %v1202, %v1206
  %v1208 = vmul.f32 %v1203, %v1207
  %v1209 = vsel %vm452, %v1208, 0.0
  %1210 = vadd.xlane.f32.xlu0 %v1209
  %v1211 = vpop.xlane.xlu0 %1210
  %v1212 = vadd.f32 %v1211, %v1185
  %v1213 = vadd.f32 %v1212, 3.0
  %v1214 = vmax.f32 %v1213, 0.0
  %v1215 = vmin.f32 %v1214, 6.0
  %v1216 = vmul.f32 %v1215, 0.16666667
  %1218 = vset.pattern.permute.xlu0 0
  %1219 = vperm.xlu0 %1218, %v1216
  %v1220 = vpop.permute.xlu0 %1219
  %v1222 = vadd.f32 %v1181, %v1183
  %1223 = vadd.xlane.f32.xlu0 %v1222
  %v1224 = vpop.xlane.xlu0 %1223
  %v1225 = vmul.f32 %v1224, %v1189
  %v1226 = vmul.f32 %v1191, %v1225
  %v1227 = vsel %vm452, %v1226, 0.0
  %v1228 = vrot.slane %v1227, 4
  %v1229 = vadd.f32 %v1227, %v1228
  %v1230 = vrot.slane %v1229, 2
  %v1231 = vadd.f32 %v1229, %v1230
  %v1232 = vrot.slane %v1231, 1
  %v1233 = vadd.f32 %v1231, %v1232
  %v1234 = vadd.f32 %v1233, %v1200
  %v1235 = vmax.f32 %v1234, 0.0
  %v1236 = vlaneseq
  %v1237 = vshrl.u32 %v1236, 7
  %v1238 = vsub.s32 0, %v1237
  %v1239 = vrot.slane %v1235, %v1238
  %v1240 = vmul.f32 %v1203, %v1239
  %v1241 = vsel %vm452, %v1240, 0.0
  %1242 = vadd.xlane.f32.xlu0 %v1241
  %v1243 = vpop.xlane.xlu0 %1242
  %v1244 = vadd.f32 %v1243, %v1185
  %v1245 = vadd.f32 %v1244, 3.0
  %v1246 = vmax.f32 %v1245, 0.0
  %v1247 = vmin.f32 %v1246, 6.0
  %v1248 = vmul.f32 %v1247, 0.16666667
  %1250 = vset.pattern.permute.xlu0 0
  %1251 = vperm.xlu0 %1250, %v1248
  %v1252 = vpop.permute.xlu0 %1251
  %v1254 = vmul.f32 %v1110, %v1220
  %v1255 = vmul.f32 %v1112, %v1220
  %v1256 = vmul.f32 %v1181, %v1252
  %v1257 = vmul.f32 %v1183, %v1252
  %v1258 = vadd.f32 %v1254, %v141
  %v1259 = vadd.f32 %v1255, %v143
  %v1260 = vadd.f32 %v1256, %v218
  %v1261 = vadd.f32 %v1257, %v220
  %1262 = vst [vmem:[%s9] sm:$0xff] %v1258
  %1263 = vst [vmem:[%s9 + $0x8] sm:$0xff] %v1259
  %1264 = vst [vmem:[%s9 + $0x10] sm:$0xff] %v1260
  %1265 = vst [vmem:[%s9 + $0x18] sm:$0xff] %v1261
  // Predicated region
  $region38: #{_bottleneck_se_pallas.1} parent=0 // pred_check
    _
  $region39: #{_bottleneck_se_pallas.1} parent=0 // pred_check_branch
    %1267 = sbr.rel (0) target = $region41
  $region40: #{_bottleneck_se_pallas.1} parent=0 // pred_region
    _
  $region41: #{_bottleneck_se_pallas.1} parent=0 // pred_fallthru
    _
  // Predicated region
  $region42: #{_bottleneck_se_pallas.1} parent=0 // pred_check
    _
  $region43: #{_bottleneck_se_pallas.1} parent=0 // pred_check_branch
    %1269 = sbr.rel (0) target = $region45
  $region44: #{_bottleneck_se_pallas.1} parent=0 // pred_region
    _
  $region45: #{_bottleneck_se_pallas.1} parent=0 // pred_fallthru
    _

</llo_original>
